<compile_context>
chip_gen: v7x
topology: tpu7x:2x2x1
jax: 0.10.0
libtpu: 0.0.40
codegen_flags: <defaults>
</compile_context>

<pallas_src>
import math

import jax
import jax.numpy as jnp
from jax.experimental import pallas as pl
from jax.experimental.pallas import tpu as pltpu

# ----------------------------- model config --------------------------------
DIM = 32        # embedding dim
BN_DIM = 32     # unused by forward (kept for parity with module signature)
DEPTH = 2
HEADS = 4
DIM_HEAD = 8
MLP_DIM = 64
INNER = HEADS * DIM_HEAD          # 32
SCALE = DIM_HEAD ** (-0.5)
LN_EPS = 1e-5
INV_SQRT2 = 1.0 / math.sqrt(2.0)

B = 2           # batch
N = 8           # sequence length
BN = B * N      # flattened token rows inside the kernel

# One (32, 32) block-diagonal mask serves both the K/V replication (rows h*N+m,
# cols h*Dh+d) and the softmax-denominator segmented sum (rows/cols h*N+m),
# because N == DIM_HEAD.
assert N == DIM_HEAD and INNER == HEADS * DIM_HEAD


# ------------------------------- helpers ------------------------------------
def _layer_norm(x, g, b):
    mu = jnp.mean(x, axis=-1, keepdims=True)
    var = jnp.mean((x - mu) ** 2, axis=-1, keepdims=True)
    return (x - mu) * jax.lax.rsqrt(var + LN_EPS) * g + b


# ------------------------------- kernel ------------------------------------
def transformer_kernel(x_ref, mask_ref,
                       ln1_g_ref, ln1_b_ref, wqkv_ref, wo_ref, bo_ref,
                       ln2_g_ref, ln2_b_ref, w1_ref, b1_ref, w2_ref, b2_ref,
                       o_ref):
    # Whole batch as one block; tokens flattened to (B*N, D) for the linears.
    xf = x_ref[...].reshape(BN, DIM)                       # (16, 32)
    mask = mask_ref[...]                                   # (32, 32) block-diag 0/1

    for l in range(DEPTH):                                 # static unroll over layers
        # ---- PreNorm + Attention ----
        xn = _layer_norm(xf, ln1_g_ref[l], ln1_b_ref[l])   # (BN, D)
        qkv = jnp.dot(xn, wqkv_ref[l],
                      preferred_element_type=jnp.float32)  # (16, 96); SCALE in Q cols

        q = qkv[:, 0 * INNER:1 * INNER].reshape(B, N, INNER)   # (2, 8, 32) lanes = (h d)
        k = qkv[:, 1 * INNER:2 * INNER].reshape(B, N, INNER)
        v = qkv[:, 2 * INNER:3 * INNER].reshape(B, N, INNER)

        # Block-diagonal replication along the sublane axis:
        #   k_bd[b, h*N+m, h'*Dh+d] = k[b, m, h', d] * (h == h')
        k_bd = jnp.concatenate([k] * HEADS, axis=1) * mask      # (2, 32, 32)
        v_bd = jnp.concatenate([v] * HEADS, axis=1) * mask      # (2, 32, 32)

        # Scores for ALL heads in one batched matmul: s[b, n, h*N+m]
        s = jnp.einsum('bnd,bmd->bnm', q, k_bd,
                       preferred_element_type=jnp.float32)      # (2, 8, 32)
        # Row-global max is a valid stabilizer for every head's softmax group.
        s = s - jnp.max(s, axis=-1, keepdims=True)
        p = jnp.exp(s)

        # Per-head denominators (segmented sum over each head's N lanes)
        # as one matmul with the constant 0/1 block-diagonal mask.
        p2 = p.reshape(BN, HEADS * N)                                         # (16, 32)
        denom = jnp.dot(p2, mask, preferred_element_type=jnp.float32)         # (16, 32)
        inv = pl.reciprocal(denom, approx=True)           # EUP rcp
        inv = inv * (2.0 - denom * inv)                   # one Newton step -> f32 accuracy
        p = (p2 * inv).reshape(B, N, HEADS * N)

        # p @ V for ALL heads in one batched matmul; output lanes are already
        # in torch's '(h d)' concat order, so no per-head gather is needed.
        out = jnp.einsum('bnm,bmd->bnd', p, v_bd,
                         preferred_element_type=jnp.float32)                  # (2, 8, 32)

        attn = jnp.dot(out.reshape(BN, INNER), wo_ref[l],
                       preferred_element_type=jnp.float32) + bo_ref[l]        # (16, 32)
        xf = xf + attn                                     # residual 1

        # ---- PreNorm + FeedForward ----
        xn2 = _layer_norm(xf, ln2_g_ref[l], ln2_b_ref[l])
        h1 = jnp.dot(xn2, w1_ref[l], preferred_element_type=jnp.float32) + b1_ref[l]
        h1 = 0.5 * h1 * (1.0 + jax.lax.erf(h1 * INV_SQRT2))                   # exact GELU
        ff = jnp.dot(h1, w2_ref[l], preferred_element_type=jnp.float32) + b2_ref[l]
        xf = xf + ff                                       # residual 2

    o_ref[...] = xf.reshape(B, N, DIM)


def _full_spec(shape):
    # whole-array block, single grid step
    return pl.BlockSpec(shape, lambda i: tuple(0 for _ in shape))


# --------------------------- one-time param prep ----------------------------
def prepare_params(layers):
    """Stack per-layer params along a depth axis, fold the attention scale into
    the Q columns, and build the block-diagonal head mask.  Called ONCE (not in
    the jitted forward), so no per-call stacking / scatter-multiply overhead."""
    stacked = [jnp.stack([layer[i] for layer in layers], axis=0)
               for i in range(len(layers[0]))]
    (ln1_g, ln1_b, wqkv, wo, bo, ln2_g, ln2_b, w1, b1, w2, b2) = stacked
    wqkv = wqkv.at[:, :, :INNER].multiply(SCALE)          # fold scale into Q weights

    row_head = jnp.arange(HEADS * N) // N                 # head id of row h*N+m
    col_head = jnp.arange(HEADS * DIM_HEAD) // DIM_HEAD   # head id of col h*Dh+d
    mask = (row_head[:, None] == col_head[None, :]).astype(jnp.float32)  # (32, 32)

    return (mask, ln1_g, ln1_b, wqkv, wo, bo, ln2_g, ln2_b, w1, b1, w2, b2)


@jax.jit
def transformer_forward(x, params):
    """Fused Transformer forward: one pallas_call for all layers and the full batch."""
    ins = (x,) + tuple(params)
    return pl.pallas_call(
        transformer_kernel,
        out_shape=jax.ShapeDtypeStruct(x.shape, jnp.float32),
        grid_spec=pltpu.PrefetchScalarGridSpec(
            num_scalar_prefetch=0,
            grid=(1,),
            in_specs=[_full_spec(a.shape) for a in ins],
            out_specs=_full_spec(x.shape),
        ),
        compiler_params=pltpu.CompilerParams(
            dimension_semantics=("arbitrary",)),
    )(*ins)


# --------------------------- parameter init --------------------------------
def init_block_params(key):
    ks = jax.random.split(key, 6)
    s = 0.05
    ln1_g = jnp.ones((1, DIM), jnp.float32)
    ln1_b = jnp.zeros((1, DIM), jnp.float32)
    wqkv = s * jax.random.normal(ks[0], (DIM, 3 * INNER), jnp.float32)
    wo = s * jax.random.normal(ks[1], (INNER, DIM), jnp.float32)
    bo = s * jax.random.normal(ks[2], (1, DIM), jnp.float32)
    ln2_g = jnp.ones((1, DIM), jnp.float32)
    ln2_b = jnp.zeros((1, DIM), jnp.float32)
    w1 = s * jax.random.normal(ks[3], (DIM, MLP_DIM), jnp.float32)
    b1 = s * jax.random.normal(ks[4], (1, MLP_DIM), jnp.float32)
    w2 = s * jax.random.normal(ks[5], (MLP_DIM, DIM), jnp.float32)
    b2 = jnp.zeros((1, DIM), jnp.float32)
    return (ln1_g, ln1_b, wqkv, wo, bo, ln2_g, ln2_b, w1, b1, w2, b2)


# --------------------------- pure-JAX reference -----------------------------
def ref_block(x, p):
    ln1_g, ln1_b, wqkv, wo, bo, ln2_g, ln2_b, w1, b1, w2, b2 = p
    xn = _layer_norm(x, ln1_g, ln1_b)
    qkv = xn @ wqkv
    q, k, v = jnp.split(qkv, 3, axis=-1)

    def split_heads(t):                                   # (B,N,H*Dh)->(B,H,N,Dh)
        return t.reshape(B, N, HEADS, DIM_HEAD).transpose(0, 2, 1, 3)

    q, k, v = map(split_heads, (q, k, v))
    dots = jnp.einsum("bhnd,bhmd->bhnm", q, k) * SCALE
    attn = jax.nn.softmax(dots, axis=-1)
    out = jnp.einsum("bhnm,bhmd->bhnd", attn, v)
    out = out.transpose(0, 2, 1, 3).reshape(B, N, INNER)
    x = x + (out @ wo + bo)
    xn2 = _layer_norm(x, ln2_g, ln2_b)
    h = jax.nn.gelu(xn2 @ w1 + b1, approximate=False)
    return x + (h @ w2 + b2)


def ref_transformer(x, layers):
    for p in layers:
        x = ref_block(x, p)
    return x


# --------------------------------- main -------------------------------------
if __name__ == "__main__":
    key = jax.random.PRNGKey(0)
    kx, kp = jax.random.split(key)
    x = jax.random.normal(kx, (B, N, DIM), jnp.float32)

    layers = [init_block_params(jax.random.fold_in(kp, i)) for i in range(DEPTH)]
    params = prepare_params(layers)          # one-time prep, outside the jitted forward

    out = jax.block_until_ready(transformer_forward(x, params))
    ref = jax.block_until_ready(ref_transformer(x, layers))

    assert out.shape == (B, N, DIM)
    assert jnp.allclose(out, ref, rtol=1e-4, atol=1e-4), "mismatch vs reference"

    print("KERNEL_OK")
</pallas_src>

<mosaic_0001>
module attributes {stable_mosaic.version = 11 : i64} {
  func.func @transformer_kernel(%arg0: i32, %arg1: memref<2x8x32xf32, #tpu.memory_space<vmem>>, %arg2: memref<32x32xf32, #tpu.memory_space<vmem>>, %arg3: memref<2x1x32xf32, #tpu.memory_space<vmem>>, %arg4: memref<2x1x32xf32, #tpu.memory_space<vmem>>, %arg5: memref<2x32x96xf32, #tpu.memory_space<vmem>>, %arg6: memref<2x32x32xf32, #tpu.memory_space<vmem>>, %arg7: memref<2x1x32xf32, #tpu.memory_space<vmem>>, %arg8: memref<2x1x32xf32, #tpu.memory_space<vmem>>, %arg9: memref<2x1x32xf32, #tpu.memory_space<vmem>>, %arg10: memref<2x32x64xf32, #tpu.memory_space<vmem>>, %arg11: memref<2x1x64xf32, #tpu.memory_space<vmem>>, %arg12: memref<2x64x32xf32, #tpu.memory_space<vmem>>, %arg13: memref<2x1x32xf32, #tpu.memory_space<vmem>>, %arg14: memref<2x8x32xf32, #tpu.memory_space<vmem>>) attributes {dimension_semantics = [#tpu.dimension_semantics<arbitrary>], iteration_bounds = array<i64: 1>, scalar_prefetch = 0 : i64, scratch_operands = 0 : i64, tpu.core_type = #tpu.core_type<tc>, window_params = [{pipeline_mode = #tpu.pipeline_mode<synchronous>, transform_indices = @transform_0, window_bounds = array<i64: 2, 8, 32>}, {pipeline_mode = #tpu.pipeline_mode<synchronous>, transform_indices = @transform_1, window_bounds = array<i64: 32, 32>}, {pipeline_mode = #tpu.pipeline_mode<synchronous>, transform_indices = @transform_2, window_bounds = array<i64: 2, 1, 32>}, {pipeline_mode = #tpu.pipeline_mode<synchronous>, transform_indices = @transform_3, window_bounds = array<i64: 2, 1, 32>}, {pipeline_mode = #tpu.pipeline_mode<synchronous>, transform_indices = @transform_4, window_bounds = array<i64: 2, 32, 96>}, {pipeline_mode = #tpu.pipeline_mode<synchronous>, transform_indices = @transform_5, window_bounds = array<i64: 2, 32, 32>}, {pipeline_mode = #tpu.pipeline_mode<synchronous>, transform_indices = @transform_6, window_bounds = array<i64: 2, 1, 32>}, {pipeline_mode = #tpu.pipeline_mode<synchronous>, transform_indices = @transform_7, window_bounds = array<i64: 2, 1, 32>}, {pipeline_mode = #tpu.pipeline_mode<synchronous>, transform_indices = @transform_8, window_bounds = array<i64: 2, 1, 32>}, {pipeline_mode = #tpu.pipeline_mode<synchronous>, transform_indices = @transform_9, window_bounds = array<i64: 2, 32, 64>}, {pipeline_mode = #tpu.pipeline_mode<synchronous>, transform_indices = @transform_10, window_bounds = array<i64: 2, 1, 64>}, {pipeline_mode = #tpu.pipeline_mode<synchronous>, transform_indices = @transform_11, window_bounds = array<i64: 2, 64, 32>}, {pipeline_mode = #tpu.pipeline_mode<synchronous>, transform_indices = @transform_12, window_bounds = array<i64: 2, 1, 32>}, {pipeline_mode = #tpu.pipeline_mode<synchronous>, transform_indices = @transform_13, window_bounds = array<i64: 2, 8, 32>}]} {
    %c0 = arith.constant 0 : index
    %c0_0 = arith.constant 0 : index
    %c0_1 = arith.constant 0 : index
    %0 = vector.load %arg1[%c0, %c0_0, %c0_1] : memref<2x8x32xf32, #tpu.memory_space<vmem>>, vector<2x8x32xf32>
    %1 = vector.shape_cast %0 : vector<2x8x32xf32> to vector<16x32xf32>
    %c0_2 = arith.constant 0 : index
    %c0_3 = arith.constant 0 : index
    %2 = vector.load %arg2[%c0_2, %c0_3] : memref<32x32xf32, #tpu.memory_space<vmem>>, vector<32x32xf32>
    %c0_4 = arith.constant 0 : index
    %c0_5 = arith.constant 0 : index
    %c0_6 = arith.constant 0 : index
    %3 = vector.load %arg3[%c0_4, %c0_5, %c0_6] : memref<2x1x32xf32, #tpu.memory_space<vmem>>, vector<1x1x32xf32>
    %4 = vector.shape_cast %3 : vector<1x1x32xf32> to vector<1x32xf32>
    %c0_7 = arith.constant 0 : index
    %c0_8 = arith.constant 0 : index
    %c0_9 = arith.constant 0 : index
    %5 = vector.load %arg4[%c0_7, %c0_8, %c0_9] : memref<2x1x32xf32, #tpu.memory_space<vmem>>, vector<1x1x32xf32>
    %6 = vector.shape_cast %5 : vector<1x1x32xf32> to vector<1x32xf32>
    %cst = arith.constant dense<0.000000e+00> : vector<16xf32>
    %7 = vector.multi_reduction <add>, %1, %cst [1] : vector<16x32xf32> to vector<16xf32>
    %8 = vector.shape_cast %7 : vector<16xf32> to vector<16x1xf32>
    %cst_10 = arith.constant 3.200000e+01 : f32
    %9 = vector.broadcast %cst_10 : f32 to vector<16x1xf32>
    %10 = arith.divf %8, %9 : vector<16x1xf32>
    %11 = vector.broadcast %10 : vector<16x1xf32> to vector<16x32xf32>
    %12 = arith.subf %1, %11 : vector<16x32xf32>
    %13 = arith.mulf %12, %12 : vector<16x32xf32>
    %cst_11 = arith.constant dense<0.000000e+00> : vector<16xf32>
    %14 = vector.multi_reduction <add>, %13, %cst_11 [1] : vector<16x32xf32> to vector<16xf32>
    %15 = vector.shape_cast %14 : vector<16xf32> to vector<16x1xf32>
    %cst_12 = arith.constant 3.200000e+01 : f32
    %16 = vector.broadcast %cst_12 : f32 to vector<16x1xf32>
    %17 = arith.divf %15, %16 : vector<16x1xf32>
    %18 = vector.broadcast %10 : vector<16x1xf32> to vector<16x32xf32>
    %19 = arith.subf %1, %18 : vector<16x32xf32>
    %cst_13 = arith.constant 9.99999974E-6 : f32
    %20 = vector.broadcast %cst_13 : f32 to vector<16x1xf32>
    %21 = arith.addf %17, %20 : vector<16x1xf32>
    %22 = math.rsqrt %21 : vector<16x1xf32>
    %23 = vector.broadcast %22 : vector<16x1xf32> to vector<16x32xf32>
    %24 = arith.mulf %19, %23 : vector<16x32xf32>
    %25 = vector.broadcast %4 : vector<1x32xf32> to vector<16x32xf32>
    %26 = arith.mulf %24, %25 : vector<16x32xf32>
    %27 = vector.broadcast %6 : vector<1x32xf32> to vector<16x32xf32>
    %28 = arith.addf %26, %27 : vector<16x32xf32>
    %c0_14 = arith.constant 0 : index
    %c0_15 = arith.constant 0 : index
    %c0_16 = arith.constant 0 : index
    %29 = vector.load %arg5[%c0_14, %c0_15, %c0_16] : memref<2x32x96xf32, #tpu.memory_space<vmem>>, vector<1x32x96xf32>
    %30 = vector.shape_cast %29 : vector<1x32x96xf32> to vector<32x96xf32>
    %cst_17 = arith.constant dense<0.000000e+00> : vector<16x96xf32>
    %31 = tpu.matmul %28, %30, %cst_17 {dimension_numbers = #tpu.dot_dimension_numbers<[1], [0], [0], [1], [0, 0, 1, 1], [], []>} : vector<16x32xf32>, vector<32x96xf32>, vector<16x96xf32> -> vector<16x96xf32>
    %32 = vector.extract_strided_slice %31 {offsets = [0, 0], sizes = [16, 32], strides = [1, 1]} : vector<16x96xf32> to vector<16x32xf32>
    %33 = vector.shape_cast %32 : vector<16x32xf32> to vector<2x8x32xf32>
    %34 = vector.extract_strided_slice %31 {offsets = [0, 32], sizes = [16, 32], strides = [1, 1]} : vector<16x96xf32> to vector<16x32xf32>
    %35 = vector.shape_cast %34 : vector<16x32xf32> to vector<2x8x32xf32>
    %36 = vector.extract_strided_slice %31 {offsets = [0, 64], sizes = [16, 32], strides = [1, 1]} : vector<16x96xf32> to vector<16x32xf32>
    %37 = vector.shape_cast %36 : vector<16x32xf32> to vector<2x8x32xf32>
    %38 = tpu.concatenate %35, %35, %35, %35 in 1 : vector<2x8x32xf32>, vector<2x8x32xf32>, vector<2x8x32xf32>, vector<2x8x32xf32> -> vector<2x32x32xf32>
    %39 = vector.shape_cast %2 : vector<32x32xf32> to vector<1x32x32xf32>
    %40 = vector.broadcast %39 : vector<1x32x32xf32> to vector<2x32x32xf32>
    %41 = arith.mulf %38, %40 : vector<2x32x32xf32>
    %42 = tpu.concatenate %37, %37, %37, %37 in 1 : vector<2x8x32xf32>, vector<2x8x32xf32>, vector<2x8x32xf32>, vector<2x8x32xf32> -> vector<2x32x32xf32>
    %43 = vector.shape_cast %2 : vector<32x32xf32> to vector<1x32x32xf32>
    %44 = vector.broadcast %43 : vector<1x32x32xf32> to vector<2x32x32xf32>
    %45 = arith.mulf %42, %44 : vector<2x32x32xf32>
    "tpu.trace_start"() <{level = 10 : i32, message = "bnd,bmd->bnm"}> : () -> ()
    %cst_18 = arith.constant dense<0.000000e+00> : vector<2x8x32xf32>
    %46 = tpu.matmul %33, %41, %cst_18 {dimension_numbers = #tpu.dot_dimension_numbers<[2], [2], [1], [1], [0, 0, 0, 1, 1, 1], [0], [0]>} : vector<2x8x32xf32>, vector<2x32x32xf32>, vector<2x8x32xf32> -> vector<2x8x32xf32>
    "tpu.trace_stop"() : () -> ()
    %cst_19 = arith.constant dense<0xFF800000> : vector<2x8xf32>
    %47 = vector.multi_reduction <maximumf>, %46, %cst_19 [2] : vector<2x8x32xf32> to vector<2x8xf32>
    %48 = vector.shape_cast %47 : vector<2x8xf32> to vector<2x8x1xf32>
    %49 = vector.broadcast %48 : vector<2x8x1xf32> to vector<2x8x32xf32>
    %50 = arith.subf %46, %49 : vector<2x8x32xf32>
    %51 = math.exp %50 : vector<2x8x32xf32>
    %52 = vector.shape_cast %51 : vector<2x8x32xf32> to vector<16x32xf32>
    %cst_20 = arith.constant dense<0.000000e+00> : vector<16x32xf32>
    %53 = tpu.matmul %52, %2, %cst_20 {dimension_numbers = #tpu.dot_dimension_numbers<[1], [0], [0], [1], [0, 0, 1, 1], [], []>} : vector<16x32xf32>, vector<32x32xf32>, vector<16x32xf32> -> vector<16x32xf32>
    %54 = tpu.reciprocal %53 {approx = true} : vector<16x32xf32> -> vector<16x32xf32>
    %55 = arith.mulf %53, %54 : vector<16x32xf32>
    %cst_21 = arith.constant 2.000000e+00 : f32
    %56 = vector.broadcast %cst_21 : f32 to vector<16x32xf32>
    %57 = arith.subf %56, %55 : vector<16x32xf32>
    %58 = arith.mulf %54, %57 : vector<16x32xf32>
    %59 = arith.mulf %52, %58 : vector<16x32xf32>
    %60 = vector.shape_cast %59 : vector<16x32xf32> to vector<2x8x32xf32>
    "tpu.trace_start"() <{level = 10 : i32, message = "bnm,bmd->bnd"}> : () -> ()
    %cst_22 = arith.constant dense<0.000000e+00> : vector<2x8x32xf32>
    %61 = tpu.matmul %60, %45, %cst_22 {dimension_numbers = #tpu.dot_dimension_numbers<[2], [1], [1], [2], [0, 0, 0, 1, 1, 2], [0], [0]>} : vector<2x8x32xf32>, vector<2x32x32xf32>, vector<2x8x32xf32> -> vector<2x8x32xf32>
    "tpu.trace_stop"() : () -> ()
    %62 = vector.shape_cast %61 : vector<2x8x32xf32> to vector<16x32xf32>
    %c0_23 = arith.constant 0 : index
    %c0_24 = arith.constant 0 : index
    %c0_25 = arith.constant 0 : index
    %63 = vector.load %arg6[%c0_23, %c0_24, %c0_25] : memref<2x32x32xf32, #tpu.memory_space<vmem>>, vector<1x32x32xf32>
    %64 = vector.shape_cast %63 : vector<1x32x32xf32> to vector<32x32xf32>
    %cst_26 = arith.constant dense<0.000000e+00> : vector<16x32xf32>
    %65 = tpu.matmul %62, %64, %cst_26 {dimension_numbers = #tpu.dot_dimension_numbers<[1], [0], [0], [1], [0, 0, 1, 1], [], []>} : vector<16x32xf32>, vector<32x32xf32>, vector<16x32xf32> -> vector<16x32xf32>
    %c0_27 = arith.constant 0 : index
    %c0_28 = arith.constant 0 : index
    %c0_29 = arith.constant 0 : index
    %66 = vector.load %arg7[%c0_27, %c0_28, %c0_29] : memref<2x1x32xf32, #tpu.memory_space<vmem>>, vector<1x1x32xf32>
    %67 = vector.shape_cast %66 : vector<1x1x32xf32> to vector<1x32xf32>
    %68 = vector.broadcast %67 : vector<1x32xf32> to vector<16x32xf32>
    %69 = arith.addf %65, %68 : vector<16x32xf32>
    %70 = arith.addf %1, %69 : vector<16x32xf32>
    %c0_30 = arith.constant 0 : index
    %c0_31 = arith.constant 0 : index
    %c0_32 = arith.constant 0 : index
    %71 = vector.load %arg8[%c0_30, %c0_31, %c0_32] : memref<2x1x32xf32, #tpu.memory_space<vmem>>, vector<1x1x32xf32>
    %72 = vector.shape_cast %71 : vector<1x1x32xf32> to vector<1x32xf32>
    %c0_33 = arith.constant 0 : index
    %c0_34 = arith.constant 0 : index
    %c0_35 = arith.constant 0 : index
    %73 = vector.load %arg9[%c0_33, %c0_34, %c0_35] : memref<2x1x32xf32, #tpu.memory_space<vmem>>, vector<1x1x32xf32>
    %74 = vector.shape_cast %73 : vector<1x1x32xf32> to vector<1x32xf32>
    %cst_36 = arith.constant dense<0.000000e+00> : vector<16xf32>
    %75 = vector.multi_reduction <add>, %70, %cst_36 [1] : vector<16x32xf32> to vector<16xf32>
    %76 = vector.shape_cast %75 : vector<16xf32> to vector<16x1xf32>
    %cst_37 = arith.constant 3.200000e+01 : f32
    %77 = vector.broadcast %cst_37 : f32 to vector<16x1xf32>
    %78 = arith.divf %76, %77 : vector<16x1xf32>
    %79 = vector.broadcast %78 : vector<16x1xf32> to vector<16x32xf32>
    %80 = arith.subf %70, %79 : vector<16x32xf32>
    %81 = arith.mulf %80, %80 : vector<16x32xf32>
    %cst_38 = arith.constant dense<0.000000e+00> : vector<16xf32>
    %82 = vector.multi_reduction <add>, %81, %cst_38 [1] : vector<16x32xf32> to vector<16xf32>
    %83 = vector.shape_cast %82 : vector<16xf32> to vector<16x1xf32>
    %cst_39 = arith.constant 3.200000e+01 : f32
    %84 = vector.broadcast %cst_39 : f32 to vector<16x1xf32>
    %85 = arith.divf %83, %84 : vector<16x1xf32>
    %86 = vector.broadcast %78 : vector<16x1xf32> to vector<16x32xf32>
    %87 = arith.subf %70, %86 : vector<16x32xf32>
    %cst_40 = arith.constant 9.99999974E-6 : f32
    %88 = vector.broadcast %cst_40 : f32 to vector<16x1xf32>
    %89 = arith.addf %85, %88 : vector<16x1xf32>
    %90 = math.rsqrt %89 : vector<16x1xf32>
    %91 = vector.broadcast %90 : vector<16x1xf32> to vector<16x32xf32>
    %92 = arith.mulf %87, %91 : vector<16x32xf32>
    %93 = vector.broadcast %72 : vector<1x32xf32> to vector<16x32xf32>
    %94 = arith.mulf %92, %93 : vector<16x32xf32>
    %95 = vector.broadcast %74 : vector<1x32xf32> to vector<16x32xf32>
    %96 = arith.addf %94, %95 : vector<16x32xf32>
    %c0_41 = arith.constant 0 : index
    %c0_42 = arith.constant 0 : index
    %c0_43 = arith.constant 0 : index
    %97 = vector.load %arg10[%c0_41, %c0_42, %c0_43] : memref<2x32x64xf32, #tpu.memory_space<vmem>>, vector<1x32x64xf32>
    %98 = vector.shape_cast %97 : vector<1x32x64xf32> to vector<32x64xf32>
    %cst_44 = arith.constant dense<0.000000e+00> : vector<16x64xf32>
    %99 = tpu.matmul %96, %98, %cst_44 {dimension_numbers = #tpu.dot_dimension_numbers<[1], [0], [0], [1], [0, 0, 1, 1], [], []>} : vector<16x32xf32>, vector<32x64xf32>, vector<16x64xf32> -> vector<16x64xf32>
    %c0_45 = arith.constant 0 : index
    %c0_46 = arith.constant 0 : index
    %c0_47 = arith.constant 0 : index
    %100 = vector.load %arg11[%c0_45, %c0_46, %c0_47] : memref<2x1x64xf32, #tpu.memory_space<vmem>>, vector<1x1x64xf32>
    %101 = vector.shape_cast %100 : vector<1x1x64xf32> to vector<1x64xf32>
    %102 = vector.broadcast %101 : vector<1x64xf32> to vector<16x64xf32>
    %103 = arith.addf %99, %102 : vector<16x64xf32>
    %cst_48 = arith.constant 5.000000e-01 : f32
    %104 = vector.broadcast %cst_48 : f32 to vector<16x64xf32>
    %105 = arith.mulf %104, %103 : vector<16x64xf32>
    %cst_49 = arith.constant 0.707106769 : f32
    %106 = vector.broadcast %cst_49 : f32 to vector<16x64xf32>
    %107 = arith.mulf %103, %106 : vector<16x64xf32>
    %108 = math.erf %107 : vector<16x64xf32>
    %cst_50 = arith.constant 1.000000e+00 : f32
    %109 = vector.broadcast %cst_50 : f32 to vector<16x64xf32>
    %110 = arith.addf %109, %108 : vector<16x64xf32>
    %111 = arith.mulf %105, %110 : vector<16x64xf32>
    %c0_51 = arith.constant 0 : index
    %c0_52 = arith.constant 0 : index
    %c0_53 = arith.constant 0 : index
    %112 = vector.load %arg12[%c0_51, %c0_52, %c0_53] : memref<2x64x32xf32, #tpu.memory_space<vmem>>, vector<1x64x32xf32>
    %113 = vector.shape_cast %112 : vector<1x64x32xf32> to vector<64x32xf32>
    %cst_54 = arith.constant dense<0.000000e+00> : vector<16x32xf32>
    %114 = tpu.matmul %111, %113, %cst_54 {dimension_numbers = #tpu.dot_dimension_numbers<[1], [0], [0], [1], [0, 0, 1, 1], [], []>} : vector<16x64xf32>, vector<64x32xf32>, vector<16x32xf32> -> vector<16x32xf32>
    %c0_55 = arith.constant 0 : index
    %c0_56 = arith.constant 0 : index
    %c0_57 = arith.constant 0 : index
    %115 = vector.load %arg13[%c0_55, %c0_56, %c0_57] : memref<2x1x32xf32, #tpu.memory_space<vmem>>, vector<1x1x32xf32>
    %116 = vector.shape_cast %115 : vector<1x1x32xf32> to vector<1x32xf32>
    %117 = vector.broadcast %116 : vector<1x32xf32> to vector<16x32xf32>
    %118 = arith.addf %114, %117 : vector<16x32xf32>
    %119 = arith.addf %70, %118 : vector<16x32xf32>
    %c1 = arith.constant 1 : index
    %c0_58 = arith.constant 0 : index
    %c0_59 = arith.constant 0 : index
    %120 = vector.load %arg3[%c1, %c0_58, %c0_59] : memref<2x1x32xf32, #tpu.memory_space<vmem>>, vector<1x1x32xf32>
    %121 = vector.shape_cast %120 : vector<1x1x32xf32> to vector<1x32xf32>
    %c1_60 = arith.constant 1 : index
    %c0_61 = arith.constant 0 : index
    %c0_62 = arith.constant 0 : index
    %122 = vector.load %arg4[%c1_60, %c0_61, %c0_62] : memref<2x1x32xf32, #tpu.memory_space<vmem>>, vector<1x1x32xf32>
    %123 = vector.shape_cast %122 : vector<1x1x32xf32> to vector<1x32xf32>
    %cst_63 = arith.constant dense<0.000000e+00> : vector<16xf32>
    %124 = vector.multi_reduction <add>, %119, %cst_63 [1] : vector<16x32xf32> to vector<16xf32>
    %125 = vector.shape_cast %124 : vector<16xf32> to vector<16x1xf32>
    %cst_64 = arith.constant 3.200000e+01 : f32
    %126 = vector.broadcast %cst_64 : f32 to vector<16x1xf32>
    %127 = arith.divf %125, %126 : vector<16x1xf32>
    %128 = vector.broadcast %127 : vector<16x1xf32> to vector<16x32xf32>
    %129 = arith.subf %119, %128 : vector<16x32xf32>
    %130 = arith.mulf %129, %129 : vector<16x32xf32>
    %cst_65 = arith.constant dense<0.000000e+00> : vector<16xf32>
    %131 = vector.multi_reduction <add>, %130, %cst_65 [1] : vector<16x32xf32> to vector<16xf32>
    %132 = vector.shape_cast %131 : vector<16xf32> to vector<16x1xf32>
    %cst_66 = arith.constant 3.200000e+01 : f32
    %133 = vector.broadcast %cst_66 : f32 to vector<16x1xf32>
    %134 = arith.divf %132, %133 : vector<16x1xf32>
    %135 = vector.broadcast %127 : vector<16x1xf32> to vector<16x32xf32>
    %136 = arith.subf %119, %135 : vector<16x32xf32>
    %cst_67 = arith.constant 9.99999974E-6 : f32
    %137 = vector.broadcast %cst_67 : f32 to vector<16x1xf32>
    %138 = arith.addf %134, %137 : vector<16x1xf32>
    %139 = math.rsqrt %138 : vector<16x1xf32>
    %140 = vector.broadcast %139 : vector<16x1xf32> to vector<16x32xf32>
    %141 = arith.mulf %136, %140 : vector<16x32xf32>
    %142 = vector.broadcast %121 : vector<1x32xf32> to vector<16x32xf32>
    %143 = arith.mulf %141, %142 : vector<16x32xf32>
    %144 = vector.broadcast %123 : vector<1x32xf32> to vector<16x32xf32>
    %145 = arith.addf %143, %144 : vector<16x32xf32>
    %c1_68 = arith.constant 1 : index
    %c0_69 = arith.constant 0 : index
    %c0_70 = arith.constant 0 : index
    %146 = vector.load %arg5[%c1_68, %c0_69, %c0_70] : memref<2x32x96xf32, #tpu.memory_space<vmem>>, vector<1x32x96xf32>
    %147 = vector.shape_cast %146 : vector<1x32x96xf32> to vector<32x96xf32>
    %cst_71 = arith.constant dense<0.000000e+00> : vector<16x96xf32>
    %148 = tpu.matmul %145, %147, %cst_71 {dimension_numbers = #tpu.dot_dimension_numbers<[1], [0], [0], [1], [0, 0, 1, 1], [], []>} : vector<16x32xf32>, vector<32x96xf32>, vector<16x96xf32> -> vector<16x96xf32>
    %149 = vector.extract_strided_slice %148 {offsets = [0, 0], sizes = [16, 32], strides = [1, 1]} : vector<16x96xf32> to vector<16x32xf32>
    %150 = vector.shape_cast %149 : vector<16x32xf32> to vector<2x8x32xf32>
    %151 = vector.extract_strided_slice %148 {offsets = [0, 32], sizes = [16, 32], strides = [1, 1]} : vector<16x96xf32> to vector<16x32xf32>
    %152 = vector.shape_cast %151 : vector<16x32xf32> to vector<2x8x32xf32>
    %153 = vector.extract_strided_slice %148 {offsets = [0, 64], sizes = [16, 32], strides = [1, 1]} : vector<16x96xf32> to vector<16x32xf32>
    %154 = vector.shape_cast %153 : vector<16x32xf32> to vector<2x8x32xf32>
    %155 = tpu.concatenate %152, %152, %152, %152 in 1 : vector<2x8x32xf32>, vector<2x8x32xf32>, vector<2x8x32xf32>, vector<2x8x32xf32> -> vector<2x32x32xf32>
    %156 = vector.shape_cast %2 : vector<32x32xf32> to vector<1x32x32xf32>
    %157 = vector.broadcast %156 : vector<1x32x32xf32> to vector<2x32x32xf32>
    %158 = arith.mulf %155, %157 : vector<2x32x32xf32>
    %159 = tpu.concatenate %154, %154, %154, %154 in 1 : vector<2x8x32xf32>, vector<2x8x32xf32>, vector<2x8x32xf32>, vector<2x8x32xf32> -> vector<2x32x32xf32>
    %160 = vector.shape_cast %2 : vector<32x32xf32> to vector<1x32x32xf32>
    %161 = vector.broadcast %160 : vector<1x32x32xf32> to vector<2x32x32xf32>
    %162 = arith.mulf %159, %161 : vector<2x32x32xf32>
    "tpu.trace_start"() <{level = 10 : i32, message = "bnd,bmd->bnm"}> : () -> ()
    %cst_72 = arith.constant dense<0.000000e+00> : vector<2x8x32xf32>
    %163 = tpu.matmul %150, %158, %cst_72 {dimension_numbers = #tpu.dot_dimension_numbers<[2], [2], [1], [1], [0, 0, 0, 1, 1, 1], [0], [0]>} : vector<2x8x32xf32>, vector<2x32x32xf32>, vector<2x8x32xf32> -> vector<2x8x32xf32>
    "tpu.trace_stop"() : () -> ()
    %cst_73 = arith.constant dense<0xFF800000> : vector<2x8xf32>
    %164 = vector.multi_reduction <maximumf>, %163, %cst_73 [2] : vector<2x8x32xf32> to vector<2x8xf32>
    %165 = vector.shape_cast %164 : vector<2x8xf32> to vector<2x8x1xf32>
    %166 = vector.broadcast %165 : vector<2x8x1xf32> to vector<2x8x32xf32>
    %167 = arith.subf %163, %166 : vector<2x8x32xf32>
    %168 = math.exp %167 : vector<2x8x32xf32>
    %169 = vector.shape_cast %168 : vector<2x8x32xf32> to vector<16x32xf32>
    %cst_74 = arith.constant dense<0.000000e+00> : vector<16x32xf32>
    %170 = tpu.matmul %169, %2, %cst_74 {dimension_numbers = #tpu.dot_dimension_numbers<[1], [0], [0], [1], [0, 0, 1, 1], [], []>} : vector<16x32xf32>, vector<32x32xf32>, vector<16x32xf32> -> vector<16x32xf32>
    %171 = tpu.reciprocal %170 {approx = true} : vector<16x32xf32> -> vector<16x32xf32>
    %172 = arith.mulf %170, %171 : vector<16x32xf32>
    %cst_75 = arith.constant 2.000000e+00 : f32
    %173 = vector.broadcast %cst_75 : f32 to vector<16x32xf32>
    %174 = arith.subf %173, %172 : vector<16x32xf32>
    %175 = arith.mulf %171, %174 : vector<16x32xf32>
    %176 = arith.mulf %169, %175 : vector<16x32xf32>
    %177 = vector.shape_cast %176 : vector<16x32xf32> to vector<2x8x32xf32>
    "tpu.trace_start"() <{level = 10 : i32, message = "bnm,bmd->bnd"}> : () -> ()
    %cst_76 = arith.constant dense<0.000000e+00> : vector<2x8x32xf32>
    %178 = tpu.matmul %177, %162, %cst_76 {dimension_numbers = #tpu.dot_dimension_numbers<[2], [1], [1], [2], [0, 0, 0, 1, 1, 2], [0], [0]>} : vector<2x8x32xf32>, vector<2x32x32xf32>, vector<2x8x32xf32> -> vector<2x8x32xf32>
    "tpu.trace_stop"() : () -> ()
    %179 = vector.shape_cast %178 : vector<2x8x32xf32> to vector<16x32xf32>
    %c1_77 = arith.constant 1 : index
    %c0_78 = arith.constant 0 : index
    %c0_79 = arith.constant 0 : index
    %180 = vector.load %arg6[%c1_77, %c0_78, %c0_79] : memref<2x32x32xf32, #tpu.memory_space<vmem>>, vector<1x32x32xf32>
    %181 = vector.shape_cast %180 : vector<1x32x32xf32> to vector<32x32xf32>
    %cst_80 = arith.constant dense<0.000000e+00> : vector<16x32xf32>
    %182 = tpu.matmul %179, %181, %cst_80 {dimension_numbers = #tpu.dot_dimension_numbers<[1], [0], [0], [1], [0, 0, 1, 1], [], []>} : vector<16x32xf32>, vector<32x32xf32>, vector<16x32xf32> -> vector<16x32xf32>
    %c1_81 = arith.constant 1 : index
    %c0_82 = arith.constant 0 : index
    %c0_83 = arith.constant 0 : index
    %183 = vector.load %arg7[%c1_81, %c0_82, %c0_83] : memref<2x1x32xf32, #tpu.memory_space<vmem>>, vector<1x1x32xf32>
    %184 = vector.shape_cast %183 : vector<1x1x32xf32> to vector<1x32xf32>
    %185 = vector.broadcast %184 : vector<1x32xf32> to vector<16x32xf32>
    %186 = arith.addf %182, %185 : vector<16x32xf32>
    %187 = arith.addf %119, %186 : vector<16x32xf32>
    %c1_84 = arith.constant 1 : index
    %c0_85 = arith.constant 0 : index
    %c0_86 = arith.constant 0 : index
    %188 = vector.load %arg8[%c1_84, %c0_85, %c0_86] : memref<2x1x32xf32, #tpu.memory_space<vmem>>, vector<1x1x32xf32>
    %189 = vector.shape_cast %188 : vector<1x1x32xf32> to vector<1x32xf32>
    %c1_87 = arith.constant 1 : index
    %c0_88 = arith.constant 0 : index
    %c0_89 = arith.constant 0 : index
    %190 = vector.load %arg9[%c1_87, %c0_88, %c0_89] : memref<2x1x32xf32, #tpu.memory_space<vmem>>, vector<1x1x32xf32>
    %191 = vector.shape_cast %190 : vector<1x1x32xf32> to vector<1x32xf32>
    %cst_90 = arith.constant dense<0.000000e+00> : vector<16xf32>
    %192 = vector.multi_reduction <add>, %187, %cst_90 [1] : vector<16x32xf32> to vector<16xf32>
    %193 = vector.shape_cast %192 : vector<16xf32> to vector<16x1xf32>
    %cst_91 = arith.constant 3.200000e+01 : f32
    %194 = vector.broadcast %cst_91 : f32 to vector<16x1xf32>
    %195 = arith.divf %193, %194 : vector<16x1xf32>
    %196 = vector.broadcast %195 : vector<16x1xf32> to vector<16x32xf32>
    %197 = arith.subf %187, %196 : vector<16x32xf32>
    %198 = arith.mulf %197, %197 : vector<16x32xf32>
    %cst_92 = arith.constant dense<0.000000e+00> : vector<16xf32>
    %199 = vector.multi_reduction <add>, %198, %cst_92 [1] : vector<16x32xf32> to vector<16xf32>
    %200 = vector.shape_cast %199 : vector<16xf32> to vector<16x1xf32>
    %cst_93 = arith.constant 3.200000e+01 : f32
    %201 = vector.broadcast %cst_93 : f32 to vector<16x1xf32>
    %202 = arith.divf %200, %201 : vector<16x1xf32>
    %203 = vector.broadcast %195 : vector<16x1xf32> to vector<16x32xf32>
    %204 = arith.subf %187, %203 : vector<16x32xf32>
    %cst_94 = arith.constant 9.99999974E-6 : f32
    %205 = vector.broadcast %cst_94 : f32 to vector<16x1xf32>
    %206 = arith.addf %202, %205 : vector<16x1xf32>
    %207 = math.rsqrt %206 : vector<16x1xf32>
    %208 = vector.broadcast %207 : vector<16x1xf32> to vector<16x32xf32>
    %209 = arith.mulf %204, %208 : vector<16x32xf32>
    %210 = vector.broadcast %189 : vector<1x32xf32> to vector<16x32xf32>
    %211 = arith.mulf %209, %210 : vector<16x32xf32>
    %212 = vector.broadcast %191 : vector<1x32xf32> to vector<16x32xf32>
    %213 = arith.addf %211, %212 : vector<16x32xf32>
    %c1_95 = arith.constant 1 : index
    %c0_96 = arith.constant 0 : index
    %c0_97 = arith.constant 0 : index
    %214 = vector.load %arg10[%c1_95, %c0_96, %c0_97] : memref<2x32x64xf32, #tpu.memory_space<vmem>>, vector<1x32x64xf32>
    %215 = vector.shape_cast %214 : vector<1x32x64xf32> to vector<32x64xf32>
    %cst_98 = arith.constant dense<0.000000e+00> : vector<16x64xf32>
    %216 = tpu.matmul %213, %215, %cst_98 {dimension_numbers = #tpu.dot_dimension_numbers<[1], [0], [0], [1], [0, 0, 1, 1], [], []>} : vector<16x32xf32>, vector<32x64xf32>, vector<16x64xf32> -> vector<16x64xf32>
    %c1_99 = arith.constant 1 : index
    %c0_100 = arith.constant 0 : index
    %c0_101 = arith.constant 0 : index
    %217 = vector.load %arg11[%c1_99, %c0_100, %c0_101] : memref<2x1x64xf32, #tpu.memory_space<vmem>>, vector<1x1x64xf32>
    %218 = vector.shape_cast %217 : vector<1x1x64xf32> to vector<1x64xf32>
    %219 = vector.broadcast %218 : vector<1x64xf32> to vector<16x64xf32>
    %220 = arith.addf %216, %219 : vector<16x64xf32>
    %cst_102 = arith.constant 5.000000e-01 : f32
    %221 = vector.broadcast %cst_102 : f32 to vector<16x64xf32>
    %222 = arith.mulf %221, %220 : vector<16x64xf32>
    %cst_103 = arith.constant 0.707106769 : f32
    %223 = vector.broadcast %cst_103 : f32 to vector<16x64xf32>
    %224 = arith.mulf %220, %223 : vector<16x64xf32>
    %225 = math.erf %224 : vector<16x64xf32>
    %cst_104 = arith.constant 1.000000e+00 : f32
    %226 = vector.broadcast %cst_104 : f32 to vector<16x64xf32>
    %227 = arith.addf %226, %225 : vector<16x64xf32>
    %228 = arith.mulf %222, %227 : vector<16x64xf32>
    %c1_105 = arith.constant 1 : index
    %c0_106 = arith.constant 0 : index
    %c0_107 = arith.constant 0 : index
    %229 = vector.load %arg12[%c1_105, %c0_106, %c0_107] : memref<2x64x32xf32, #tpu.memory_space<vmem>>, vector<1x64x32xf32>
    %230 = vector.shape_cast %229 : vector<1x64x32xf32> to vector<64x32xf32>
    %cst_108 = arith.constant dense<0.000000e+00> : vector<16x32xf32>
    %231 = tpu.matmul %228, %230, %cst_108 {dimension_numbers = #tpu.dot_dimension_numbers<[1], [0], [0], [1], [0, 0, 1, 1], [], []>} : vector<16x64xf32>, vector<64x32xf32>, vector<16x32xf32> -> vector<16x32xf32>
    %c1_109 = arith.constant 1 : index
    %c0_110 = arith.constant 0 : index
    %c0_111 = arith.constant 0 : index
    %232 = vector.load %arg13[%c1_109, %c0_110, %c0_111] : memref<2x1x32xf32, #tpu.memory_space<vmem>>, vector<1x1x32xf32>
    %233 = vector.shape_cast %232 : vector<1x1x32xf32> to vector<1x32xf32>
    %234 = vector.broadcast %233 : vector<1x32xf32> to vector<16x32xf32>
    %235 = arith.addf %231, %234 : vector<16x32xf32>
    %236 = arith.addf %187, %235 : vector<16x32xf32>
    %237 = vector.shape_cast %236 : vector<16x32xf32> to vector<2x8x32xf32>
    %c0_112 = arith.constant 0 : index
    %c0_113 = arith.constant 0 : index
    %c0_114 = arith.constant 0 : index
    %238 = vector.load %arg14[%c0_112, %c0_113, %c0_114] : memref<2x8x32xf32, #tpu.memory_space<vmem>>, vector<2x8x32xf32>
    tpu.vector_store %arg14[%c0_112, %c0_113, %c0_114], %237 {strides = array<i32>} : memref<2x8x32xf32, #tpu.memory_space<vmem>>, vector<2x8x32xf32>,
    return
  }
  func.func @transform_0(%arg0: i32) -> (i32, i32, i32) {
    %c0_i32 = arith.constant 0 : i32
    %c0_i32_0 = arith.constant 0 : i32
    %c0_i32_1 = arith.constant 0 : i32
    %c0_i32_2 = arith.constant 0 : i32
    return %c0_i32, %c0_i32_0, %c0_i32_1 : i32, i32, i32
  }
  func.func @transform_1(%arg0: i32) -> (i32, i32) {
    %c0_i32 = arith.constant 0 : i32
    %c0_i32_0 = arith.constant 0 : i32
    %c0_i32_1 = arith.constant 0 : i32
    return %c0_i32, %c0_i32_0 : i32, i32
  }
  func.func @transform_2(%arg0: i32) -> (i32, i32, i32) {
    %c0_i32 = arith.constant 0 : i32
    %c0_i32_0 = arith.constant 0 : i32
    %c0_i32_1 = arith.constant 0 : i32
    %c0_i32_2 = arith.constant 0 : i32
    return %c0_i32, %c0_i32_0, %c0_i32_1 : i32, i32, i32
  }
  func.func @transform_3(%arg0: i32) -> (i32, i32, i32) {
    %c0_i32 = arith.constant 0 : i32
    %c0_i32_0 = arith.constant 0 : i32
    %c0_i32_1 = arith.constant 0 : i32
    %c0_i32_2 = arith.constant 0 : i32
    return %c0_i32, %c0_i32_0, %c0_i32_1 : i32, i32, i32
  }
  func.func @transform_4(%arg0: i32) -> (i32, i32, i32) {
    %c0_i32 = arith.constant 0 : i32
    %c0_i32_0 = arith.constant 0 : i32
    %c0_i32_1 = arith.constant 0 : i32
    %c0_i32_2 = arith.constant 0 : i32
    return %c0_i32, %c0_i32_0, %c0_i32_1 : i32, i32, i32
  }
  func.func @transform_5(%arg0: i32) -> (i32, i32, i32) {
    %c0_i32 = arith.constant 0 : i32
    %c0_i32_0 = arith.constant 0 : i32
    %c0_i32_1 = arith.constant 0 : i32
    %c0_i32_2 = arith.constant 0 : i32
    return %c0_i32, %c0_i32_0, %c0_i32_1 : i32, i32, i32
  }
  func.func @transform_6(%arg0: i32) -> (i32, i32, i32) {
    %c0_i32 = arith.constant 0 : i32
    %c0_i32_0 = arith.constant 0 : i32
    %c0_i32_1 = arith.constant 0 : i32
    %c0_i32_2 = arith.constant 0 : i32
    return %c0_i32, %c0_i32_0, %c0_i32_1 : i32, i32, i32
  }
  func.func @transform_7(%arg0: i32) -> (i32, i32, i32) {
    %c0_i32 = arith.constant 0 : i32
    %c0_i32_0 = arith.constant 0 : i32
    %c0_i32_1 = arith.constant 0 : i32
    %c0_i32_2 = arith.constant 0 : i32
    return %c0_i32, %c0_i32_0, %c0_i32_1 : i32, i32, i32
  }
  func.func @transform_8(%arg0: i32) -> (i32, i32, i32) {
    %c0_i32 = arith.constant 0 : i32
    %c0_i32_0 = arith.constant 0 : i32
    %c0_i32_1 = arith.constant 0 : i32
    %c0_i32_2 = arith.constant 0 : i32
    return %c0_i32, %c0_i32_0, %c0_i32_1 : i32, i32, i32
  }
  func.func @transform_9(%arg0: i32) -> (i32, i32, i32) {
    %c0_i32 = arith.constant 0 : i32
    %c0_i32_0 = arith.constant 0 : i32
    %c0_i32_1 = arith.constant 0 : i32
    %c0_i32_2 = arith.constant 0 : i32
    return %c0_i32, %c0_i32_0, %c0_i32_1 : i32, i32, i32
  }
  func.func @transform_10(%arg0: i32) -> (i32, i32, i32) {
    %c0_i32 = arith.constant 0 : i32
    %c0_i32_0 = arith.constant 0 : i32
    %c0_i32_1 = arith.constant 0 : i32
    %c0_i32_2 = arith.constant 0 : i32
    return %c0_i32, %c0_i32_0, %c0_i32_1 : i32, i32, i32
  }
  func.func @transform_11(%arg0: i32) -> (i32, i32, i32) {
    %c0_i32 = arith.constant 0 : i32
    %c0_i32_0 = arith.constant 0 : i32
    %c0_i32_1 = arith.constant 0 : i32
    %c0_i32_2 = arith.constant 0 : i32
    return %c0_i32, %c0_i32_0, %c0_i32_1 : i32, i32, i32
  }
  func.func @transform_12(%arg0: i32) -> (i32, i32, i32) {
    %c0_i32 = arith.constant 0 : i32
    %c0_i32_0 = arith.constant 0 : i32
    %c0_i32_1 = arith.constant 0 : i32
    %c0_i32_2 = arith.constant 0 : i32
    return %c0_i32, %c0_i32_0, %c0_i32_1 : i32, i32, i32
  }
  func.func @transform_13(%arg0: i32) -> (i32, i32, i32) {
    %c0_i32 = arith.constant 0 : i32
    %c0_i32_0 = arith.constant 0 : i32
    %c0_i32_1 = arith.constant 0 : i32
    %c0_i32_2 = arith.constant 0 : i32
    return %c0_i32, %c0_i32_0, %c0_i32_1 : i32, i32, i32
  }
}

</mosaic_0001>

<llo_original>
// kernel: transformer_forward.1
$region0: #{transformer_forward.1}
  #allocation0 [shape = 'u32[]', space=smem, size = 0x4, offset = 0x4, fixed_abs, tag = 'smem constant byte address 0x4 - core index']
  #allocation1 [shape = 'u32[144,128]{1,0:T(1,128)}', space=vmem, size = 0x12000, scoped, tag = 'internal scratch']
  %s0 = inlined_call_operand.hbm [shape: f32[2,8,32], index: 0, kind: input, shape index: {}]
  %s1 = inlined_call_operand.hbm [shape: f32[32,32], index: 1, kind: input, shape index: {}]
  %s2 = inlined_call_operand.vmem [shape: f32[2,1,32], index: 2, kind: input, shape index: {}]
  %s3 = inlined_call_operand.vmem [shape: f32[2,1,32], index: 3, kind: input, shape index: {}]
  %s4 = inlined_call_operand.vmem [shape: f32[2,32,96], index: 4, kind: input, shape index: {}]
  %s5 = inlined_call_operand.vmem [shape: f32[2,32,32], index: 5, kind: input, shape index: {}]
  %s6 = inlined_call_operand.vmem [shape: f32[2,1,32], index: 6, kind: input, shape index: {}]
  %s7 = inlined_call_operand.vmem [shape: f32[2,1,32], index: 7, kind: input, shape index: {}]
  %s8 = inlined_call_operand.vmem [shape: f32[2,1,32], index: 8, kind: input, shape index: {}]
  %s9 = inlined_call_operand.vmem [shape: f32[2,32,64], index: 9, kind: input, shape index: {}]
  %s10 = inlined_call_operand.vmem [shape: f32[2,1,64], index: 10, kind: input, shape index: {}]
  %s11 = inlined_call_operand.vmem [shape: f32[2,64,32], index: 11, kind: input, shape index: {}]
  %s12 = inlined_call_operand.vmem [shape: f32[2,1,32], index: 12, kind: input, shape index: {}]
  %s13 = inlined_call_operand.hbm [shape: f32[2,8,32], index: 13, kind: output, shape index: {}]
  %s14 = sld [smem:[#allocation0]]
  $region70: #{transformer_forward.1} parent=0
    _
  %s16 = ssub.s32 1, %s14
  %s17 = scalar_select 0, %s16, %s14
  $region1: #{transformer_forward.1} parent=0
    #allocation2 [shape = 'u8[8192]{0}', space=vmem, size = 0x2000, scoped, tag = 'input window, operand 0, single buffered']
    #allocation3 [shape = 's32[1]{0}', space=sflag, size = 0x4, scoped, tag = 'scoped memory for transformer_forward.1']
    #allocation4 [shape = 's32[1]{0}', space=sflag, size = 0x4, scoped, tag = 'scoped memory for transformer_forward.1']
    #allocation5 [shape = 'u8[16384]{0}', space=vmem, size = 0x4000, scoped, tag = 'input window, operand 1, single buffered']
    #allocation6 [shape = 's32[1]{0}', space=sflag, size = 0x4, scoped, tag = 'scoped memory for transformer_forward.1']
    #allocation7 [shape = 'u8[8192]{0}', space=vmem, size = 0x2000, scoped, tag = 'output window, operand 0, single buffered']
    %18 = vsyncpa [#allocation3], 0
    %19 = vsyncpa [#allocation6], 0
    %20 = vsyncpa [#allocation4], 0
    // Predicated region
    $region2: #{transformer_forward.1} parent=1 // pred_check
      _
    $region3: #{transformer_forward.1} parent=1 // pred_check_branch
      %22 = sbr.rel (0) target = $region5
    $region4: #{transformer_forward.1} parent=1 // pred_region
      %s24 = ssub.s32 256, 256
      %25 = vsyncadd [#allocation3], %s24
      %s26 = sshll.u32 [#allocation2], 4
      %s27 = int_to_ptr.vmem [resolvable:$true] %s26
      %32 = dma.hbm_to_vmem [thread:$0]  %s0, 256, %s27, [#allocation3], 128, 128, 8
    $region5: #{transformer_forward.1} parent=1 // pred_fallthru
      _
    // Predicated region
    $region6: #{transformer_forward.1} parent=1 // pred_check
      _
    $region7: #{transformer_forward.1} parent=1 // pred_check_branch
      %34 = sbr.rel (0) target = $region9
    $region8: #{transformer_forward.1} parent=1 // pred_region
      %s36 = ssub.s32 512, 512
      %37 = vsyncadd [#allocation6], %s36
      %s38 = sshll.u32 [#allocation5], 4
      %s39 = int_to_ptr.vmem [resolvable:$true] %s38
      %44 = dma.hbm_to_vmem [thread:$0]  %s1, 512, %s39, [#allocation6], 128, 128, 8
    $region9: #{transformer_forward.1} parent=1 // pred_fallthru
      _
    // Predicated region
    $region10: #{transformer_forward.1} parent=1 // pred_check
      _
    $region11: #{transformer_forward.1} parent=1 // pred_check_branch
      %46 = sbr.rel (0) target = $region13
    $region12: #{transformer_forward.1} parent=1 // pred_region
      _
    $region13: #{transformer_forward.1} parent=1 // pred_fallthru
      _
    // Predicated region
    $region14: #{transformer_forward.1} parent=1 // pred_check
      _
    $region15: #{transformer_forward.1} parent=1 // pred_check_branch
      %48 = sbr.rel (0) target = $region17
    $region16: #{transformer_forward.1} parent=1 // pred_region
      _
    $region17: #{transformer_forward.1} parent=1 // pred_fallthru
      _
    // Predicated region
    $region18: #{transformer_forward.1} parent=1 // pred_check
      _
    $region19: #{transformer_forward.1} parent=1 // pred_check_branch
      %50 = sbr.rel (0) target = $region21
    $region20: #{transformer_forward.1} parent=1 // pred_region
      _
    $region21: #{transformer_forward.1} parent=1 // pred_fallthru
      _
    // Predicated region
    $region22: #{transformer_forward.1} parent=1 // pred_check
      _
    $region23: #{transformer_forward.1} parent=1 // pred_check_branch
      %52 = sbr.rel (0) target = $region25
    $region24: #{transformer_forward.1} parent=1 // pred_region
      _
    $region25: #{transformer_forward.1} parent=1 // pred_fallthru
      _
    // Predicated region
    $region26: #{transformer_forward.1} parent=1 // pred_check
      _
    $region27: #{transformer_forward.1} parent=1 // pred_check_branch
      %54 = sbr.rel (0) target = $region29
    $region28: #{transformer_forward.1} parent=1 // pred_region
      _
    $region29: #{transformer_forward.1} parent=1 // pred_fallthru
      _
    // Predicated region
    $region30: #{transformer_forward.1} parent=1 // pred_check
      _
    $region31: #{transformer_forward.1} parent=1 // pred_check_branch
      %56 = sbr.rel (0) target = $region33
    $region32: #{transformer_forward.1} parent=1 // pred_region
      _
    $region33: #{transformer_forward.1} parent=1 // pred_fallthru
      _
    // Predicated region
    $region34: #{transformer_forward.1} parent=1 // pred_check
      _
    $region35: #{transformer_forward.1} parent=1 // pred_check_branch
      %58 = sbr.rel (0) target = $region37
    $region36: #{transformer_forward.1} parent=1 // pred_region
      _
    $region37: #{transformer_forward.1} parent=1 // pred_fallthru
      _
    // Predicated region
    $region38: #{transformer_forward.1} parent=1 // pred_check
      _
    $region39: #{transformer_forward.1} parent=1 // pred_check_branch
      %60 = sbr.rel (0) target = $region41
    $region40: #{transformer_forward.1} parent=1 // pred_region
      _
    $region41: #{transformer_forward.1} parent=1 // pred_fallthru
      _
    // Predicated region
    $region42: #{transformer_forward.1} parent=1 // pred_check
      _
    $region43: #{transformer_forward.1} parent=1 // pred_check_branch
      %62 = sbr.rel (0) target = $region45
    $region44: #{transformer_forward.1} parent=1 // pred_region
      _
    $region45: #{transformer_forward.1} parent=1 // pred_fallthru
      _
    // Predicated region
    $region46: #{transformer_forward.1} parent=1 // pred_check
      _
    $region47: #{transformer_forward.1} parent=1 // pred_check_branch
      %64 = sbr.rel (0) target = $region49
    $region48: #{transformer_forward.1} parent=1 // pred_region
      _
    $region49: #{transformer_forward.1} parent=1 // pred_fallthru
      _
    // Predicated region
    $region50: #{transformer_forward.1} parent=1 // pred_check
      _
    $region51: #{transformer_forward.1} parent=1 // pred_check_branch
      %66 = sbr.rel (0) target = $region53
    $region52: #{transformer_forward.1} parent=1 // pred_region
      _
    $region53: #{transformer_forward.1} parent=1 // pred_fallthru
      _
    // Predicated region
    $region54: #{transformer_forward.1} parent=1 // pred_check
      _
    $region55: #{transformer_forward.1} parent=1 // pred_check_branch
      %68 = sbr.rel (0) target = $region57
    $region56: #{transformer_forward.1} parent=1 // pred_region
      %69 = dma.done [#allocation3], 256
    $region57: #{transformer_forward.1} parent=1 // pred_fallthru
      _
    // Predicated region
    $region58: #{transformer_forward.1} parent=1 // pred_check
      _
    $region59: #{transformer_forward.1} parent=1 // pred_check_branch
      %71 = sbr.rel (0) target = $region61
    $region60: #{transformer_forward.1} parent=1 // pred_region
      %72 = dma.done [#allocation6], 512
    $region61: #{transformer_forward.1} parent=1 // pred_fallthru
      _
    %v73 = vld [vmem:[#allocation2] sm:$0xff]
    %v74 = vld [vmem:[#allocation2 + $0x8] sm:$0xff]
    %v75 = vld [vmem:[#allocation5] sm:$0xff]
    %v76 = vld [vmem:[#allocation5 + $0x8] sm:$0xff]
    %v77 = vld [vmem:[#allocation5 + $0x10] sm:$0xff]
    %v78 = vld [vmem:[#allocation5 + $0x18] sm:$0xff]
    %v79 = vld [vmem:[%s2] sm:$0x1]
    %v80 = vld [vmem:[%s3] sm:$0x1]
    %vm81 = vcmask 261120
    %v82 = vsel %vm81, %v73, 0.0
    %83 = vadd.xlane.f32.xlu0 %v82
    %v84 = vpop.xlane.xlu0 %83
    %v85 = vsel %vm81, %v74, 0.0
    %86 = vadd.xlane.f32.xlu0 %v85
    %v87 = vpop.xlane.xlu0 %86
    %v88 = vrcp.pop 32.0
    %v89 = vmul.f32 %v84, %v88
    %v90 = vmul.f32 %v87, %v88
    %v91 = vsub.f32 %v73, %v89
    %v92 = vsub.f32 %v74, %v90
    %v93 = vmul.f32 %v91, %v91
    %v94 = vmul.f32 %v92, %v92
    %v95 = vsel %vm81, %v93, 0.0
    %96 = vadd.xlane.f32.xlu0 %v95
    %v97 = vpop.xlane.xlu0 %96
    %v98 = vsel %vm81, %v94, 0.0
    %99 = vadd.xlane.f32.xlu0 %v98
    %v100 = vpop.xlane.xlu0 %99
    %v101 = vmul.f32 %v97, %v88
    %v102 = vmul.f32 %v100, %v88
    %v103 = vadd.f32 %v101, 1e-05
    %v104 = vadd.f32 %v102, 1e-05
    %v105 = vrsqrt.pop %v103
    %v106 = vrsqrt.pop %v104
    %v107 = vmul.f32 %v91, %v105
    %v108 = vmul.f32 %v92, %v106
    %v110 = vlaneseq
    %v111 = vshrl.u32 %v110, 7
    %v112 = vsub.s32 0, %v111
    %v113 = vrot.slane %v79, %v112
    %v115 = vmul.f32 %v107, %v113
    %v116 = vmul.f32 %v108, %v113
    %v118 = vlaneseq
    %v119 = vshrl.u32 %v118, 7
    %v120 = vsub.s32 0, %v119
    %v121 = vrot.slane %v80, %v120
    %v123 = vadd.f32 %v115, %v121
    %v124 = vadd.f32 %v116, %v121
    %v125 = vld [vmem:[%s4] sm:$0xff]
    %v126 = vld [vmem:[%s4 + $0x8] sm:$0xff]
    %v127 = vld [vmem:[%s4 + $0x10] sm:$0xff]
    %v128 = vld [vmem:[%s4 + $0x18] sm:$0xff]
    %v130 = vsel %vm81, %v123, 0
    %v133 = vsel %vm81, %v124, 0
    %135 = vmatprep.subr.mxu0 0.0
    %136 = vmatpush1.msra.mxu0 %v125
    %137 = vmatprep.subr.mxu0 0.0
    %138 = vmatpush1.msra.mxu0 %v126
    %139 = vmatprep.subr.mxu0 0.0
    %140 = vmatpush1.msra.mxu0 %v127
    %141 = vmatprep.subr.mxu0 0.0
    %142 = vmatpush1.msra.mxu0 %v128
    %143 = vmatprep.subr.mxu0 0.0
    %144 = vmatpush1.msra.mxu0 0.0
    %145 = vmatprep.subr.mxu0 0.0
    %146 = vmatpush1.msra.mxu0 0.0
    %147 = vmatprep.subr.mxu0 0.0
    %148 = vmatpush1.msra.mxu0 0.0
    %149 = vmatprep.subr.mxu0 0.0
    %150 = vmatpush1.msra.mxu0 0.0
    %151 = vmatprep.subr.mxu0 0.0
    %152 = vmatpush1.msra.mxu0 0.0
    %153 = vmatprep.subr.mxu0 0.0
    %154 = vmatpush1.msra.mxu0 0.0
    %155 = vmatprep.subr.mxu0 0.0
    %156 = vmatpush1.msra.mxu0 0.0
    %157 = vmatprep.subr.mxu0 0.0
    %158 = vmatpush1.msra.mxu0 0.0
    %159 = vmatprep.subr.mxu0 0.0
    %160 = vmatpush1.msra.mxu0 0.0
    %161 = vmatprep.subr.mxu0 0.0
    %162 = vmatpush1.msra.mxu0 0.0
    %163 = vmatprep.subr.mxu0 0.0
    %164 = vmatpush1.msra.mxu0 0.0
    %165 = vmatprep.subr.mxu0 0.0
    %166 = vmatpush1.msra.mxu0 0.0
    %167 = vmatprep.subr.mxu0 0.0
    %168 = vmatpush1.msra.mxu0 0.0
    %169 = vmatprep.subr.mxu0 0.0
    %170 = vmatpush1.msra.mxu0 0.0
    %171 = vmatprep.subr.mxu0 0.0
    %172 = vmatpush1.msra.mxu0 0.0
    %173 = vmatprep.subr.mxu0 0.0
    %174 = vmatpush1.msra.mxu0 0.0
    %175 = vmatprep.subr.mxu0 0.0
    %176 = vmatpush1.msra.mxu0 0.0
    %177 = vmatprep.subr.mxu0 0.0
    %178 = vmatpush1.msra.mxu0 0.0
    %179 = vmatprep.subr.mxu0 0.0
    %180 = vmatpush1.msra.mxu0 0.0
    %181 = vmatprep.subr.mxu0 0.0
    %182 = vmatpush1.msra.mxu0 0.0
    %183 = vmatprep.subr.mxu0 0.0
    %184 = vmatpush1.msra.mxu0 0.0
    %185 = vmatprep.subr.mxu0 0.0
    %186 = vmatpush1.msra.mxu0 0.0
    %187 = vmatprep.subr.mxu0 0.0
    %188 = vmatpush1.msra.mxu0 0.0
    %189 = vmatprep.subr.mxu0 0.0
    %190 = vmatpush1.msra.mxu0 0.0
    %191 = vmatprep.subr.mxu0 0.0
    %192 = vmatpush1.msra.mxu0 0.0
    %193 = vmatprep.subr.mxu0 0.0
    %194 = vmatpush1.msra.mxu0 0.0
    %195 = vmatprep.subr.mxu0 0.0
    %196 = vmatpush1.msra.mxu0 0.0
    %197 = vmatprep.subr.mxu0 0.0
    %198 = vmatpush1.msra.mxu0 0.0
    %199 = vmatprep.mubr.f32.mxu0 0.0
    %200 = vmatmul.mubr.f32.gmra.mrb[0].mxu0 %v130
    %v201 = vpop.f32.mrb[0].mxu0
    %v202 = vadd.f32 0.0, %v201
    %v203 = vpop.f32.mrb[0].mxu0
    %204 = vmatprep.mubr.f32.mxu0 0.0
    %205 = vmatmul.mubr.f32.gmra.mrb[0].mxu0 %v133
    %v206 = vpop.f32.mrb[0].mxu0
    %v207 = vadd.f32 0.0, %v206
    %v208 = vpop.f32.mrb[0].mxu0
    %209 = vdwg.mxu0
    %214 = vrot.lane.b32.xlu0 %v75, 32
    %v215 = vpop.permute.xlu0 %214
    %216 = vrot.lane.b32.xlu0 %v76, 32
    %v217 = vpop.permute.xlu0 %216
    %218 = vrot.lane.b32.xlu0 %v77, 32
    %v219 = vpop.permute.xlu0 %218
    %220 = vrot.lane.b32.xlu0 %v78, 32
    %v221 = vpop.permute.xlu0 %220
    %v226 = vmul.f32 %v202, %v215
    %v227 = vmul.f32 %v202, %v217
    %v228 = vmul.f32 %v202, %v219
    %v229 = vmul.f32 %v202, %v221
    %v230 = vmul.f32 %v207, %v215
    %v231 = vmul.f32 %v207, %v217
    %v232 = vmul.f32 %v207, %v219
    %v233 = vmul.f32 %v207, %v221
    %234 = vrot.lane.b32.xlu0 %v75, 64
    %v235 = vpop.permute.xlu0 %234
    %236 = vrot.lane.b32.xlu0 %v76, 64
    %v237 = vpop.permute.xlu0 %236
    %238 = vrot.lane.b32.xlu0 %v77, 64
    %v239 = vpop.permute.xlu0 %238
    %240 = vrot.lane.b32.xlu0 %v78, 64
    %v241 = vpop.permute.xlu0 %240
    %v246 = vmul.f32 %v202, %v235
    %v247 = vmul.f32 %v202, %v237
    %v248 = vmul.f32 %v202, %v239
    %v249 = vmul.f32 %v202, %v241
    %v250 = vmul.f32 %v207, %v235
    %v251 = vmul.f32 %v207, %v237
    %v252 = vmul.f32 %v207, %v239
    %v253 = vmul.f32 %v207, %v241
    %258 = vrot.lane.b32.xlu0 %v226, 96
    %v259 = vpop.permute.xlu0 %258
    %260 = vrot.lane.b32.xlu0 %v227, 96
    %v261 = vpop.permute.xlu0 %260
    %262 = vrot.lane.b32.xlu0 %v228, 96
    %v263 = vpop.permute.xlu0 %262
    %264 = vrot.lane.b32.xlu0 %v229, 96
    %v265 = vpop.permute.xlu0 %264
    %v267 = vsel %vm81, %v202, 0
    %v269 = vsel %vm81, %v259, 0
    %v271 = vsel %vm81, %v261, 0
    %v273 = vsel %vm81, %v263, 0
    %v275 = vsel %vm81, %v265, 0
    %277 = vmatprep.subr.mxu0 0.0
    %278 = vmatpush1.xpose.msra.mxu0 %v269
    %279 = vmatprep.subr.mxu0 0.0
    %280 = vmatpush1.xpose.msra.mxu0 %v271
    %281 = vmatprep.subr.mxu0 0.0
    %282 = vmatpush1.xpose.msra.mxu0 %v273
    %283 = vmatprep.subr.mxu0 0.0
    %284 = vmatpush1.xpose.msra.mxu0 %v275
    %285 = vmatprep.subr.mxu0 0.0
    %286 = vmatpush1.xpose.msra.mxu0 0.0
    %287 = vmatprep.subr.mxu0 0.0
    %288 = vmatpush1.xpose.msra.mxu0 0.0
    %289 = vmatprep.subr.mxu0 0.0
    %290 = vmatpush1.xpose.msra.mxu0 0.0
    %291 = vmatprep.subr.mxu0 0.0
    %292 = vmatpush1.xpose.msra.mxu0 0.0
    %293 = vmatprep.subr.mxu0 0.0
    %294 = vmatpush1.xpose.msra.mxu0 0.0
    %295 = vmatprep.subr.mxu0 0.0
    %296 = vmatpush1.xpose.msra.mxu0 0.0
    %297 = vmatprep.subr.mxu0 0.0
    %298 = vmatpush1.xpose.msra.mxu0 0.0
    %299 = vmatprep.subr.mxu0 0.0
    %300 = vmatpush1.xpose.msra.mxu0 0.0
    %301 = vmatprep.subr.mxu0 0.0
    %302 = vmatpush1.xpose.msra.mxu0 0.0
    %303 = vmatprep.subr.mxu0 0.0
    %304 = vmatpush1.xpose.msra.mxu0 0.0
    %305 = vmatprep.subr.mxu0 0.0
    %306 = vmatpush1.xpose.msra.mxu0 0.0
    %307 = vmatprep.subr.mxu0 0.0
    %308 = vmatpush1.xpose.msra.mxu0 0.0
    %309 = vmatprep.subr.mxu0 0.0
    %310 = vmatpush1.xpose.msra.mxu0 0.0
    %311 = vmatprep.subr.mxu0 0.0
    %312 = vmatpush1.xpose.msra.mxu0 0.0
    %313 = vmatprep.subr.mxu0 0.0
    %314 = vmatpush1.xpose.msra.mxu0 0.0
    %315 = vmatprep.subr.mxu0 0.0
    %316 = vmatpush1.xpose.msra.mxu0 0.0
    %317 = vmatprep.subr.mxu0 0.0
    %318 = vmatpush1.xpose.msra.mxu0 0.0
    %319 = vmatprep.subr.mxu0 0.0
    %320 = vmatpush1.xpose.msra.mxu0 0.0
    %321 = vmatprep.subr.mxu0 0.0
    %322 = vmatpush1.xpose.msra.mxu0 0.0
    %323 = vmatprep.subr.mxu0 0.0
    %324 = vmatpush1.xpose.msra.mxu0 0.0
    %325 = vmatprep.subr.mxu0 0.0
    %326 = vmatpush1.xpose.msra.mxu0 0.0
    %327 = vmatprep.subr.mxu0 0.0
    %328 = vmatpush1.xpose.msra.mxu0 0.0
    %329 = vmatprep.subr.mxu0 0.0
    %330 = vmatpush1.xpose.msra.mxu0 0.0
    %331 = vmatprep.subr.mxu0 0.0
    %332 = vmatpush1.xpose.msra.mxu0 0.0
    %333 = vmatprep.subr.mxu0 0.0
    %334 = vmatpush1.xpose.msra.mxu0 0.0
    %335 = vmatprep.subr.mxu0 0.0
    %336 = vmatpush1.xpose.msra.mxu0 0.0
    %337 = vmatprep.subr.mxu0 0.0
    %338 = vmatpush1.xpose.msra.mxu0 0.0
    %339 = vmatprep.subr.mxu0 0.0
    %340 = vmatpush1.xpose.msra.mxu0 0.0
    %341 = vmatprep.mubr.f32.mxu0 0.0
    %342 = vmatmul.mubr.f32.gmra.mrb[0].mxu0 %v267
    %v343 = vpop.f32.mrb[0].mxu0
    %v344 = vadd.f32 0.0, %v343
    %v345 = vpop.f32.mrb[0].mxu0
    %346 = vdwg.mxu0
    %351 = vrot.lane.b32.xlu0 %v230, 96
    %v352 = vpop.permute.xlu0 %351
    %353 = vrot.lane.b32.xlu0 %v231, 96
    %v354 = vpop.permute.xlu0 %353
    %355 = vrot.lane.b32.xlu0 %v232, 96
    %v356 = vpop.permute.xlu0 %355
    %357 = vrot.lane.b32.xlu0 %v233, 96
    %v358 = vpop.permute.xlu0 %357
    %v360 = vsel %vm81, %v207, 0
    %v362 = vsel %vm81, %v352, 0
    %v364 = vsel %vm81, %v354, 0
    %v366 = vsel %vm81, %v356, 0
    %v368 = vsel %vm81, %v358, 0
    %370 = vmatprep.subr.mxu0 0.0
    %371 = vmatpush1.xpose.msra.mxu0 %v362
    %372 = vmatprep.subr.mxu0 0.0
    %373 = vmatpush1.xpose.msra.mxu0 %v364
    %374 = vmatprep.subr.mxu0 0.0
    %375 = vmatpush1.xpose.msra.mxu0 %v366
    %376 = vmatprep.subr.mxu0 0.0
    %377 = vmatpush1.xpose.msra.mxu0 %v368
    %378 = vmatprep.subr.mxu0 0.0
    %379 = vmatpush1.xpose.msra.mxu0 0.0
    %380 = vmatprep.subr.mxu0 0.0
    %381 = vmatpush1.xpose.msra.mxu0 0.0
    %382 = vmatprep.subr.mxu0 0.0
    %383 = vmatpush1.xpose.msra.mxu0 0.0
    %384 = vmatprep.subr.mxu0 0.0
    %385 = vmatpush1.xpose.msra.mxu0 0.0
    %386 = vmatprep.subr.mxu0 0.0
    %387 = vmatpush1.xpose.msra.mxu0 0.0
    %388 = vmatprep.subr.mxu0 0.0
    %389 = vmatpush1.xpose.msra.mxu0 0.0
    %390 = vmatprep.subr.mxu0 0.0
    %391 = vmatpush1.xpose.msra.mxu0 0.0
    %392 = vmatprep.subr.mxu0 0.0
    %393 = vmatpush1.xpose.msra.mxu0 0.0
    %394 = vmatprep.subr.mxu0 0.0
    %395 = vmatpush1.xpose.msra.mxu0 0.0
    %396 = vmatprep.subr.mxu0 0.0
    %397 = vmatpush1.xpose.msra.mxu0 0.0
    %398 = vmatprep.subr.mxu0 0.0
    %399 = vmatpush1.xpose.msra.mxu0 0.0
    %400 = vmatprep.subr.mxu0 0.0
    %401 = vmatpush1.xpose.msra.mxu0 0.0
    %402 = vmatprep.subr.mxu0 0.0
    %403 = vmatpush1.xpose.msra.mxu0 0.0
    %404 = vmatprep.subr.mxu0 0.0
    %405 = vmatpush1.xpose.msra.mxu0 0.0
    %406 = vmatprep.subr.mxu0 0.0
    %407 = vmatpush1.xpose.msra.mxu0 0.0
    %408 = vmatprep.subr.mxu0 0.0
    %409 = vmatpush1.xpose.msra.mxu0 0.0
    %410 = vmatprep.subr.mxu0 0.0
    %411 = vmatpush1.xpose.msra.mxu0 0.0
    %412 = vmatprep.subr.mxu0 0.0
    %413 = vmatpush1.xpose.msra.mxu0 0.0
    %414 = vmatprep.subr.mxu0 0.0
    %415 = vmatpush1.xpose.msra.mxu0 0.0
    %416 = vmatprep.subr.mxu0 0.0
    %417 = vmatpush1.xpose.msra.mxu0 0.0
    %418 = vmatprep.subr.mxu0 0.0
    %419 = vmatpush1.xpose.msra.mxu0 0.0
    %420 = vmatprep.subr.mxu0 0.0
    %421 = vmatpush1.xpose.msra.mxu0 0.0
    %422 = vmatprep.subr.mxu0 0.0
    %423 = vmatpush1.xpose.msra.mxu0 0.0
    %424 = vmatprep.subr.mxu0 0.0
    %425 = vmatpush1.xpose.msra.mxu0 0.0
    %426 = vmatprep.subr.mxu0 0.0
    %427 = vmatpush1.xpose.msra.mxu0 0.0
    %428 = vmatprep.subr.mxu0 0.0
    %429 = vmatpush1.xpose.msra.mxu0 0.0
    %430 = vmatprep.subr.mxu0 0.0
    %431 = vmatpush1.xpose.msra.mxu0 0.0
    %432 = vmatprep.subr.mxu0 0.0
    %433 = vmatpush1.xpose.msra.mxu0 0.0
    %434 = vmatprep.mubr.f32.mxu0 0.0
    %435 = vmatmul.mubr.f32.gmra.mrb[0].mxu0 %v360
    %v436 = vpop.f32.mrb[0].mxu0
    %v437 = vadd.f32 0.0, %v436
    %v438 = vpop.f32.mrb[0].mxu0
    %439 = vdwg.mxu0
    %v440 = vsel %vm81, %v344, -inf
    %441 = vmax.xlane.f32.xlu0 %v440
    %v442 = vpop.xlane.xlu0 %441
    %v443 = vsel %vm81, %v437, -inf
    %444 = vmax.xlane.f32.xlu0 %v443
    %v445 = vpop.xlane.xlu0 %444
    %v446 = vsub.f32 %v344, %v442
    %v447 = vsub.f32 %v437, %v445
    %v448 = vmul.f32 %v446, 1.442695
    %v449 = vpow.pop %v448
    %v450 = vmul.f32 %v447, 1.442695
    %v451 = vpow.pop %v450
    %v453 = vsel %vm81, %v449, 0
    %v456 = vsel %vm81, %v451, 0
    %458 = vmatprep.subr.mxu0 0.0
    %459 = vmatpush1.msra.mxu0 %v75
    %460 = vmatprep.subr.mxu0 0.0
    %461 = vmatpush1.msra.mxu0 %v76
    %462 = vmatprep.subr.mxu0 0.0
    %463 = vmatpush1.msra.mxu0 %v77
    %464 = vmatprep.subr.mxu0 0.0
    %465 = vmatpush1.msra.mxu0 %v78
    %466 = vmatprep.subr.mxu0 0.0
    %467 = vmatpush1.msra.mxu0 0.0
    %468 = vmatprep.subr.mxu0 0.0
    %469 = vmatpush1.msra.mxu0 0.0
    %470 = vmatprep.subr.mxu0 0.0
    %471 = vmatpush1.msra.mxu0 0.0
    %472 = vmatprep.subr.mxu0 0.0
    %473 = vmatpush1.msra.mxu0 0.0
    %474 = vmatprep.subr.mxu0 0.0
    %475 = vmatpush1.msra.mxu0 0.0
    %476 = vmatprep.subr.mxu0 0.0
    %477 = vmatpush1.msra.mxu0 0.0
    %478 = vmatprep.subr.mxu0 0.0
    %479 = vmatpush1.msra.mxu0 0.0
    %480 = vmatprep.subr.mxu0 0.0
    %481 = vmatpush1.msra.mxu0 0.0
    %482 = vmatprep.subr.mxu0 0.0
    %483 = vmatpush1.msra.mxu0 0.0
    %484 = vmatprep.subr.mxu0 0.0
    %485 = vmatpush1.msra.mxu0 0.0
    %486 = vmatprep.subr.mxu0 0.0
    %487 = vmatpush1.msra.mxu0 0.0
    %488 = vmatprep.subr.mxu0 0.0
    %489 = vmatpush1.msra.mxu0 0.0
    %490 = vmatprep.subr.mxu0 0.0
    %491 = vmatpush1.msra.mxu0 0.0
    %492 = vmatprep.subr.mxu0 0.0
    %493 = vmatpush1.msra.mxu0 0.0
    %494 = vmatprep.subr.mxu0 0.0
    %495 = vmatpush1.msra.mxu0 0.0
    %496 = vmatprep.subr.mxu0 0.0
    %497 = vmatpush1.msra.mxu0 0.0
    %498 = vmatprep.subr.mxu0 0.0
    %499 = vmatpush1.msra.mxu0 0.0
    %500 = vmatprep.subr.mxu0 0.0
    %501 = vmatpush1.msra.mxu0 0.0
    %502 = vmatprep.subr.mxu0 0.0
    %503 = vmatpush1.msra.mxu0 0.0
    %504 = vmatprep.subr.mxu0 0.0
    %505 = vmatpush1.msra.mxu0 0.0
    %506 = vmatprep.subr.mxu0 0.0
    %507 = vmatpush1.msra.mxu0 0.0
    %508 = vmatprep.subr.mxu0 0.0
    %509 = vmatpush1.msra.mxu0 0.0
    %510 = vmatprep.subr.mxu0 0.0
    %511 = vmatpush1.msra.mxu0 0.0
    %512 = vmatprep.subr.mxu0 0.0
    %513 = vmatpush1.msra.mxu0 0.0
    %514 = vmatprep.subr.mxu0 0.0
    %515 = vmatpush1.msra.mxu0 0.0
    %516 = vmatprep.subr.mxu0 0.0
    %517 = vmatpush1.msra.mxu0 0.0
    %518 = vmatprep.subr.mxu0 0.0
    %519 = vmatpush1.msra.mxu0 0.0
    %520 = vmatprep.subr.mxu0 0.0
    %521 = vmatpush1.msra.mxu0 0.0
    %522 = vmatprep.mubr.f32.mxu0 0.0
    %523 = vmatmul.mubr.f32.gmra.mrb[0].mxu0 %v453
    %v524 = vpop.f32.mrb[0].mxu0
    %v525 = vadd.f32 0.0, %v524
    %v526 = vpop.f32.mrb[0].mxu0
    %527 = vmatprep.mubr.f32.mxu0 0.0
    %528 = vmatmul.mubr.f32.gmra.mrb[0].mxu0 %v456
    %v529 = vpop.f32.mrb[0].mxu0
    %v530 = vadd.f32 0.0, %v529
    %v531 = vpop.f32.mrb[0].mxu0
    %532 = vdwg.mxu0
    %v533 = vrcp.pop %v525
    %v534 = vrcp.pop %v530
    %v535 = vmul.f32 %v525, %v533
    %v536 = vmul.f32 %v530, %v534
    %v537 = vsub.f32 2.0, %v535
    %v538 = vsub.f32 2.0, %v536
    %v539 = vmul.f32 %v533, %v537
    %v540 = vmul.f32 %v534, %v538
    %v541 = vmul.f32 %v449, %v539
    %v542 = vmul.f32 %v451, %v540
    %547 = vrot.lane.b32.xlu0 %v246, 64
    %v548 = vpop.permute.xlu0 %547
    %549 = vrot.lane.b32.xlu0 %v247, 64
    %v550 = vpop.permute.xlu0 %549
    %551 = vrot.lane.b32.xlu0 %v248, 64
    %v552 = vpop.permute.xlu0 %551
    %553 = vrot.lane.b32.xlu0 %v249, 64
    %v554 = vpop.permute.xlu0 %553
    %v560 = vsel %vm81, %v541, 0
    %562 = vmatprep.subr.mxu0 0.0
    %563 = vmatpush1.msra.mxu0 %v548
    %564 = vmatprep.subr.mxu0 0.0
    %565 = vmatpush1.msra.mxu0 %v550
    %566 = vmatprep.subr.mxu0 0.0
    %567 = vmatpush1.msra.mxu0 %v552
    %568 = vmatprep.subr.mxu0 0.0
    %569 = vmatpush1.msra.mxu0 %v554
    %570 = vmatprep.subr.mxu0 0.0
    %571 = vmatpush1.msra.mxu0 0.0
    %572 = vmatprep.subr.mxu0 0.0
    %573 = vmatpush1.msra.mxu0 0.0
    %574 = vmatprep.subr.mxu0 0.0
    %575 = vmatpush1.msra.mxu0 0.0
    %576 = vmatprep.subr.mxu0 0.0
    %577 = vmatpush1.msra.mxu0 0.0
    %578 = vmatprep.subr.mxu0 0.0
    %579 = vmatpush1.msra.mxu0 0.0
    %580 = vmatprep.subr.mxu0 0.0
    %581 = vmatpush1.msra.mxu0 0.0
    %582 = vmatprep.subr.mxu0 0.0
    %583 = vmatpush1.msra.mxu0 0.0
    %584 = vmatprep.subr.mxu0 0.0
    %585 = vmatpush1.msra.mxu0 0.0
    %586 = vmatprep.subr.mxu0 0.0
    %587 = vmatpush1.msra.mxu0 0.0
    %588 = vmatprep.subr.mxu0 0.0
    %589 = vmatpush1.msra.mxu0 0.0
    %590 = vmatprep.subr.mxu0 0.0
    %591 = vmatpush1.msra.mxu0 0.0
    %592 = vmatprep.subr.mxu0 0.0
    %593 = vmatpush1.msra.mxu0 0.0
    %594 = vmatprep.subr.mxu0 0.0
    %595 = vmatpush1.msra.mxu0 0.0
    %596 = vmatprep.subr.mxu0 0.0
    %597 = vmatpush1.msra.mxu0 0.0
    %598 = vmatprep.subr.mxu0 0.0
    %599 = vmatpush1.msra.mxu0 0.0
    %600 = vmatprep.subr.mxu0 0.0
    %601 = vmatpush1.msra.mxu0 0.0
    %602 = vmatprep.subr.mxu0 0.0
    %603 = vmatpush1.msra.mxu0 0.0
    %604 = vmatprep.subr.mxu0 0.0
    %605 = vmatpush1.msra.mxu0 0.0
    %606 = vmatprep.subr.mxu0 0.0
    %607 = vmatpush1.msra.mxu0 0.0
    %608 = vmatprep.subr.mxu0 0.0
    %609 = vmatpush1.msra.mxu0 0.0
    %610 = vmatprep.subr.mxu0 0.0
    %611 = vmatpush1.msra.mxu0 0.0
    %612 = vmatprep.subr.mxu0 0.0
    %613 = vmatpush1.msra.mxu0 0.0
    %614 = vmatprep.subr.mxu0 0.0
    %615 = vmatpush1.msra.mxu0 0.0
    %616 = vmatprep.subr.mxu0 0.0
    %617 = vmatpush1.msra.mxu0 0.0
    %618 = vmatprep.subr.mxu0 0.0
    %619 = vmatpush1.msra.mxu0 0.0
    %620 = vmatprep.subr.mxu0 0.0
    %621 = vmatpush1.msra.mxu0 0.0
    %622 = vmatprep.subr.mxu0 0.0
    %623 = vmatpush1.msra.mxu0 0.0
    %624 = vmatprep.subr.mxu0 0.0
    %625 = vmatpush1.msra.mxu0 0.0
    %626 = vmatprep.mubr.f32.mxu0 0.0
    %627 = vmatmul.mubr.f32.gmra.mrb[0].mxu0 %v560
    %v628 = vpop.f32.mrb[0].mxu0
    %v629 = vadd.f32 0.0, %v628
    %v630 = vpop.f32.mrb[0].mxu0
    %631 = vdwg.mxu0
    %636 = vrot.lane.b32.xlu0 %v250, 64
    %v637 = vpop.permute.xlu0 %636
    %638 = vrot.lane.b32.xlu0 %v251, 64
    %v639 = vpop.permute.xlu0 %638
    %640 = vrot.lane.b32.xlu0 %v252, 64
    %v641 = vpop.permute.xlu0 %640
    %642 = vrot.lane.b32.xlu0 %v253, 64
    %v643 = vpop.permute.xlu0 %642
    %v649 = vsel %vm81, %v542, 0
    %651 = vmatprep.subr.mxu0 0.0
    %652 = vmatpush1.msra.mxu0 %v637
    %653 = vmatprep.subr.mxu0 0.0
    %654 = vmatpush1.msra.mxu0 %v639
    %655 = vmatprep.subr.mxu0 0.0
    %656 = vmatpush1.msra.mxu0 %v641
    %657 = vmatprep.subr.mxu0 0.0
    %658 = vmatpush1.msra.mxu0 %v643
    %659 = vmatprep.subr.mxu0 0.0
    %660 = vmatpush1.msra.mxu0 0.0
    %661 = vmatprep.subr.mxu0 0.0
    %662 = vmatpush1.msra.mxu0 0.0
    %663 = vmatprep.subr.mxu0 0.0
    %664 = vmatpush1.msra.mxu0 0.0
    %665 = vmatprep.subr.mxu0 0.0
    %666 = vmatpush1.msra.mxu0 0.0
    %667 = vmatprep.subr.mxu0 0.0
    %668 = vmatpush1.msra.mxu0 0.0
    %669 = vmatprep.subr.mxu0 0.0
    %670 = vmatpush1.msra.mxu0 0.0
    %671 = vmatprep.subr.mxu0 0.0
    %672 = vmatpush1.msra.mxu0 0.0
    %673 = vmatprep.subr.mxu0 0.0
    %674 = vmatpush1.msra.mxu0 0.0
    %675 = vmatprep.subr.mxu0 0.0
    %676 = vmatpush1.msra.mxu0 0.0
    %677 = vmatprep.subr.mxu0 0.0
    %678 = vmatpush1.msra.mxu0 0.0
    %679 = vmatprep.subr.mxu0 0.0
    %680 = vmatpush1.msra.mxu0 0.0
    %681 = vmatprep.subr.mxu0 0.0
    %682 = vmatpush1.msra.mxu0 0.0
    %683 = vmatprep.subr.mxu0 0.0
    %684 = vmatpush1.msra.mxu0 0.0
    %685 = vmatprep.subr.mxu0 0.0
    %686 = vmatpush1.msra.mxu0 0.0
    %687 = vmatprep.subr.mxu0 0.0
    %688 = vmatpush1.msra.mxu0 0.0
    %689 = vmatprep.subr.mxu0 0.0
    %690 = vmatpush1.msra.mxu0 0.0
    %691 = vmatprep.subr.mxu0 0.0
    %692 = vmatpush1.msra.mxu0 0.0
    %693 = vmatprep.subr.mxu0 0.0
    %694 = vmatpush1.msra.mxu0 0.0
    %695 = vmatprep.subr.mxu0 0.0
    %696 = vmatpush1.msra.mxu0 0.0
    %697 = vmatprep.subr.mxu0 0.0
    %698 = vmatpush1.msra.mxu0 0.0
    %699 = vmatprep.subr.mxu0 0.0
    %700 = vmatpush1.msra.mxu0 0.0
    %701 = vmatprep.subr.mxu0 0.0
    %702 = vmatpush1.msra.mxu0 0.0
    %703 = vmatprep.subr.mxu0 0.0
    %704 = vmatpush1.msra.mxu0 0.0
    %705 = vmatprep.subr.mxu0 0.0
    %706 = vmatpush1.msra.mxu0 0.0
    %707 = vmatprep.subr.mxu0 0.0
    %708 = vmatpush1.msra.mxu0 0.0
    %709 = vmatprep.subr.mxu0 0.0
    %710 = vmatpush1.msra.mxu0 0.0
    %711 = vmatprep.subr.mxu0 0.0
    %712 = vmatpush1.msra.mxu0 0.0
    %713 = vmatprep.subr.mxu0 0.0
    %714 = vmatpush1.msra.mxu0 0.0
    %715 = vmatprep.mubr.f32.mxu0 0.0
    %716 = vmatmul.mubr.f32.gmra.mrb[0].mxu0 %v649
    %v717 = vpop.f32.mrb[0].mxu0
    %v718 = vadd.f32 0.0, %v717
    %v719 = vpop.f32.mrb[0].mxu0
    %720 = vdwg.mxu0
    %v721 = vld [vmem:[%s5] sm:$0xff]
    %v722 = vld [vmem:[%s5 + $0x8] sm:$0xff]
    %v723 = vld [vmem:[%s5 + $0x10] sm:$0xff]
    %v724 = vld [vmem:[%s5 + $0x18] sm:$0xff]
    %v725 = vld [vmem:[%s6] sm:$0x1]
    %v727 = vlaneseq
    %v728 = vshrl.u32 %v727, 7
    %v729 = vsub.s32 0, %v728
    %v730 = vrot.slane %v725, %v729
    %v733 = vsel %vm81, %v629, 0
    %v736 = vsel %vm81, %v718, 0
    %738 = vmatprep.subr.mxu0 0.0
    %739 = vmatpush1.msra.mxu0 %v721
    %740 = vmatprep.subr.mxu0 0.0
    %741 = vmatpush1.msra.mxu0 %v722
    %742 = vmatprep.subr.mxu0 0.0
    %743 = vmatpush1.msra.mxu0 %v723
    %744 = vmatprep.subr.mxu0 0.0
    %745 = vmatpush1.msra.mxu0 %v724
    %746 = vmatprep.subr.mxu0 0.0
    %747 = vmatpush1.msra.mxu0 0.0
    %748 = vmatprep.subr.mxu0 0.0
    %749 = vmatpush1.msra.mxu0 0.0
    %750 = vmatprep.subr.mxu0 0.0
    %751 = vmatpush1.msra.mxu0 0.0
    %752 = vmatprep.subr.mxu0 0.0
    %753 = vmatpush1.msra.mxu0 0.0
    %754 = vmatprep.subr.mxu0 0.0
    %755 = vmatpush1.msra.mxu0 0.0
    %756 = vmatprep.subr.mxu0 0.0
    %757 = vmatpush1.msra.mxu0 0.0
    %758 = vmatprep.subr.mxu0 0.0
    %759 = vmatpush1.msra.mxu0 0.0
    %760 = vmatprep.subr.mxu0 0.0
    %761 = vmatpush1.msra.mxu0 0.0
    %762 = vmatprep.subr.mxu0 0.0
    %763 = vmatpush1.msra.mxu0 0.0
    %764 = vmatprep.subr.mxu0 0.0
    %765 = vmatpush1.msra.mxu0 0.0
    %766 = vmatprep.subr.mxu0 0.0
    %767 = vmatpush1.msra.mxu0 0.0
    %768 = vmatprep.subr.mxu0 0.0
    %769 = vmatpush1.msra.mxu0 0.0
    %770 = vmatprep.subr.mxu0 0.0
    %771 = vmatpush1.msra.mxu0 0.0
    %772 = vmatprep.subr.mxu0 0.0
    %773 = vmatpush1.msra.mxu0 0.0
    %774 = vmatprep.subr.mxu0 0.0
    %775 = vmatpush1.msra.mxu0 0.0
    %776 = vmatprep.subr.mxu0 0.0
    %777 = vmatpush1.msra.mxu0 0.0
    %778 = vmatprep.subr.mxu0 0.0
    %779 = vmatpush1.msra.mxu0 0.0
    %780 = vmatprep.subr.mxu0 0.0
    %781 = vmatpush1.msra.mxu0 0.0
    %782 = vmatprep.subr.mxu0 0.0
    %783 = vmatpush1.msra.mxu0 0.0
    %784 = vmatprep.subr.mxu0 0.0
    %785 = vmatpush1.msra.mxu0 0.0
    %786 = vmatprep.subr.mxu0 0.0
    %787 = vmatpush1.msra.mxu0 0.0
    %788 = vmatprep.subr.mxu0 0.0
    %789 = vmatpush1.msra.mxu0 0.0
    %790 = vmatprep.subr.mxu0 0.0
    %791 = vmatpush1.msra.mxu0 0.0
    %792 = vmatprep.subr.mxu0 0.0
    %793 = vmatpush1.msra.mxu0 0.0
    %794 = vmatprep.subr.mxu0 0.0
    %795 = vmatpush1.msra.mxu0 0.0
    %796 = vmatprep.subr.mxu0 0.0
    %797 = vmatpush1.msra.mxu0 0.0
    %798 = vmatprep.subr.mxu0 0.0
    %799 = vmatpush1.msra.mxu0 0.0
    %800 = vmatprep.subr.mxu0 0.0
    %801 = vmatpush1.msra.mxu0 0.0
    %802 = vmatprep.mubr.f32.mxu0 0.0
    %803 = vmatmul.mubr.f32.gmra.mrb[0].mxu0 %v733
    %v804 = vpop.f32.mrb[0].mxu0
    %v805 = vadd.f32 %v730, %v804
    %v806 = vpop.f32.mrb[0].mxu0
    %807 = vmatprep.mubr.f32.mxu0 0.0
    %808 = vmatmul.mubr.f32.gmra.mrb[0].mxu0 %v736
    %v809 = vpop.f32.mrb[0].mxu0
    %v810 = vadd.f32 %v730, %v809
    %v811 = vpop.f32.mrb[0].mxu0
    %812 = vdwg.mxu0
    %v813 = vadd.f32 %v73, %v805
    %v814 = vadd.f32 %v74, %v810
    %v815 = vld [vmem:[%s7] sm:$0x1]
    %v816 = vld [vmem:[%s8] sm:$0x1]
    %v817 = vsel %vm81, %v813, 0.0
    %818 = vadd.xlane.f32.xlu0 %v817
    %v819 = vpop.xlane.xlu0 %818
    %v820 = vsel %vm81, %v814, 0.0
    %821 = vadd.xlane.f32.xlu0 %v820
    %v822 = vpop.xlane.xlu0 %821
    %v823 = vmul.f32 %v819, %v88
    %v824 = vmul.f32 %v822, %v88
    %v825 = vsub.f32 %v813, %v823
    %v826 = vsub.f32 %v814, %v824
    %v827 = vmul.f32 %v825, %v825
    %v828 = vmul.f32 %v826, %v826
    %v829 = vsel %vm81, %v827, 0.0
    %830 = vadd.xlane.f32.xlu0 %v829
    %v831 = vpop.xlane.xlu0 %830
    %v832 = vsel %vm81, %v828, 0.0
    %833 = vadd.xlane.f32.xlu0 %v832
    %v834 = vpop.xlane.xlu0 %833
    %v835 = vmul.f32 %v831, %v88
    %v836 = vmul.f32 %v834, %v88
    %v837 = vadd.f32 %v835, 1e-05
    %v838 = vadd.f32 %v836, 1e-05
    %v839 = vrsqrt.pop %v837
    %v840 = vrsqrt.pop %v838
    %v841 = vmul.f32 %v825, %v839
    %v842 = vmul.f32 %v826, %v840
    %v844 = vlaneseq
    %v845 = vshrl.u32 %v844, 7
    %v846 = vsub.s32 0, %v845
    %v847 = vrot.slane %v815, %v846
    %v849 = vmul.f32 %v841, %v847
    %v850 = vmul.f32 %v842, %v847
    %v852 = vlaneseq
    %v853 = vshrl.u32 %v852, 7
    %v854 = vsub.s32 0, %v853
    %v855 = vrot.slane %v816, %v854
    %v857 = vadd.f32 %v849, %v855
    %v858 = vadd.f32 %v850, %v855
    %v859 = vld [vmem:[%s9] sm:$0xff]
    %v860 = vld [vmem:[%s9 + $0x8] sm:$0xff]
    %v861 = vld [vmem:[%s9 + $0x10] sm:$0xff]
    %v862 = vld [vmem:[%s9 + $0x18] sm:$0xff]
    %v863 = vld [vmem:[%s10] sm:$0x1]
    %v865 = vlaneseq
    %v866 = vshrl.u32 %v865, 7
    %v867 = vsub.s32 0, %v866
    %v868 = vrot.slane %v863, %v867
    %v871 = vsel %vm81, %v857, 0
    %v874 = vsel %vm81, %v858, 0
    %876 = vmatprep.subr.mxu0 0.0
    %877 = vmatpush1.msra.mxu0 %v859
    %878 = vmatprep.subr.mxu0 0.0
    %879 = vmatpush1.msra.mxu0 %v860
    %880 = vmatprep.subr.mxu0 0.0
    %881 = vmatpush1.msra.mxu0 %v861
    %882 = vmatprep.subr.mxu0 0.0
    %883 = vmatpush1.msra.mxu0 %v862
    %884 = vmatprep.subr.mxu0 0.0
    %885 = vmatpush1.msra.mxu0 0.0
    %886 = vmatprep.subr.mxu0 0.0
    %887 = vmatpush1.msra.mxu0 0.0
    %888 = vmatprep.subr.mxu0 0.0
    %889 = vmatpush1.msra.mxu0 0.0
    %890 = vmatprep.subr.mxu0 0.0
    %891 = vmatpush1.msra.mxu0 0.0
    %892 = vmatprep.subr.mxu0 0.0
    %893 = vmatpush1.msra.mxu0 0.0
    %894 = vmatprep.subr.mxu0 0.0
    %895 = vmatpush1.msra.mxu0 0.0
    %896 = vmatprep.subr.mxu0 0.0
    %897 = vmatpush1.msra.mxu0 0.0
    %898 = vmatprep.subr.mxu0 0.0
    %899 = vmatpush1.msra.mxu0 0.0
    %900 = vmatprep.subr.mxu0 0.0
    %901 = vmatpush1.msra.mxu0 0.0
    %902 = vmatprep.subr.mxu0 0.0
    %903 = vmatpush1.msra.mxu0 0.0
    %904 = vmatprep.subr.mxu0 0.0
    %905 = vmatpush1.msra.mxu0 0.0
    %906 = vmatprep.subr.mxu0 0.0
    %907 = vmatpush1.msra.mxu0 0.0
    %908 = vmatprep.subr.mxu0 0.0
    %909 = vmatpush1.msra.mxu0 0.0
    %910 = vmatprep.subr.mxu0 0.0
    %911 = vmatpush1.msra.mxu0 0.0
    %912 = vmatprep.subr.mxu0 0.0
    %913 = vmatpush1.msra.mxu0 0.0
    %914 = vmatprep.subr.mxu0 0.0
    %915 = vmatpush1.msra.mxu0 0.0
    %916 = vmatprep.subr.mxu0 0.0
    %917 = vmatpush1.msra.mxu0 0.0
    %918 = vmatprep.subr.mxu0 0.0
    %919 = vmatpush1.msra.mxu0 0.0
    %920 = vmatprep.subr.mxu0 0.0
    %921 = vmatpush1.msra.mxu0 0.0
    %922 = vmatprep.subr.mxu0 0.0
    %923 = vmatpush1.msra.mxu0 0.0
    %924 = vmatprep.subr.mxu0 0.0
    %925 = vmatpush1.msra.mxu0 0.0
    %926 = vmatprep.subr.mxu0 0.0
    %927 = vmatpush1.msra.mxu0 0.0
    %928 = vmatprep.subr.mxu0 0.0
    %929 = vmatpush1.msra.mxu0 0.0
    %930 = vmatprep.subr.mxu0 0.0
    %931 = vmatpush1.msra.mxu0 0.0
    %932 = vmatprep.subr.mxu0 0.0
    %933 = vmatpush1.msra.mxu0 0.0
    %934 = vmatprep.subr.mxu0 0.0
    %935 = vmatpush1.msra.mxu0 0.0
    %936 = vmatprep.subr.mxu0 0.0
    %937 = vmatpush1.msra.mxu0 0.0
    %938 = vmatprep.subr.mxu0 0.0
    %939 = vmatpush1.msra.mxu0 0.0
    %940 = vmatprep.mubr.f32.mxu0 0.0
    %941 = vmatmul.mubr.f32.gmra.mrb[0].mxu0 %v871
    %v942 = vpop.f32.mrb[0].mxu0
    %v943 = vadd.f32 %v868, %v942
    %v944 = vpop.f32.mrb[0].mxu0
    %945 = vmatprep.mubr.f32.mxu0 0.0
    %946 = vmatmul.mubr.f32.gmra.mrb[0].mxu0 %v874
    %v947 = vpop.f32.mrb[0].mxu0
    %v948 = vadd.f32 %v868, %v947
    %v949 = vpop.f32.mrb[0].mxu0
    %950 = vdwg.mxu0
    %v951 = vmul.f32 %v943, 0.5
    %v952 = vmul.f32 %v948, 0.5
    %v953 = vmul.f32 %v943, 0.70710677
    %v954 = vmul.f32 %v948, 0.70710677
    %v955 = verf.f32.pop %v953
    %v956 = verf.f32.pop %v954
    %v957 = vadd.f32 %v955, 1.0
    %v958 = vadd.f32 %v956, 1.0
    %v959 = vmul.f32 %v951, %v957
    %v960 = vmul.f32 %v952, %v958
    %v961 = vld [vmem:[%s11] sm:$0xff]
    %v962 = vld [vmem:[%s11 + $0x8] sm:$0xff]
    %v963 = vld [vmem:[%s11 + $0x10] sm:$0xff]
    %v964 = vld [vmem:[%s11 + $0x18] sm:$0xff]
    %v965 = vld [vmem:[%s11 + $0x20] sm:$0xff]
    %v966 = vld [vmem:[%s11 + $0x28] sm:$0xff]
    %v967 = vld [vmem:[%s11 + $0x30] sm:$0xff]
    %v968 = vld [vmem:[%s11 + $0x38] sm:$0xff]
    %v969 = vld [vmem:[%s12] sm:$0x1]
    %v971 = vlaneseq
    %v972 = vshrl.u32 %v971, 7
    %v973 = vsub.s32 0, %v972
    %v974 = vrot.slane %v969, %v973
    %vm976 = vcmask 523264
    %v978 = vsel %vm976, %v959, 0
    %v981 = vsel %vm976, %v960, 0
    %983 = vmatprep.subr.mxu0 0.0
    %984 = vmatpush1.msra.mxu0 %v961
    %985 = vmatprep.subr.mxu0 0.0
    %986 = vmatpush1.msra.mxu0 %v962
    %987 = vmatprep.subr.mxu0 0.0
    %988 = vmatpush1.msra.mxu0 %v963
    %989 = vmatprep.subr.mxu0 0.0
    %990 = vmatpush1.msra.mxu0 %v964
    %991 = vmatprep.subr.mxu0 0.0
    %992 = vmatpush1.msra.mxu0 %v965
    %993 = vmatprep.subr.mxu0 0.0
    %994 = vmatpush1.msra.mxu0 %v966
    %995 = vmatprep.subr.mxu0 0.0
    %996 = vmatpush1.msra.mxu0 %v967
    %997 = vmatprep.subr.mxu0 0.0
    %998 = vmatpush1.msra.mxu0 %v968
    %999 = vmatprep.subr.mxu0 0.0
    %1000 = vmatpush1.msra.mxu0 0.0
    %1001 = vmatprep.subr.mxu0 0.0
    %1002 = vmatpush1.msra.mxu0 0.0
    %1003 = vmatprep.subr.mxu0 0.0
    %1004 = vmatpush1.msra.mxu0 0.0
    %1005 = vmatprep.subr.mxu0 0.0
    %1006 = vmatpush1.msra.mxu0 0.0
    %1007 = vmatprep.subr.mxu0 0.0
    %1008 = vmatpush1.msra.mxu0 0.0
    %1009 = vmatprep.subr.mxu0 0.0
    %1010 = vmatpush1.msra.mxu0 0.0
    %1011 = vmatprep.subr.mxu0 0.0
    %1012 = vmatpush1.msra.mxu0 0.0
    %1013 = vmatprep.subr.mxu0 0.0
    %1014 = vmatpush1.msra.mxu0 0.0
    %1015 = vmatprep.subr.mxu0 0.0
    %1016 = vmatpush1.msra.mxu0 0.0
    %1017 = vmatprep.subr.mxu0 0.0
    %1018 = vmatpush1.msra.mxu0 0.0
    %1019 = vmatprep.subr.mxu0 0.0
    %1020 = vmatpush1.msra.mxu0 0.0
    %1021 = vmatprep.subr.mxu0 0.0
    %1022 = vmatpush1.msra.mxu0 0.0
    %1023 = vmatprep.subr.mxu0 0.0
    %1024 = vmatpush1.msra.mxu0 0.0
    %1025 = vmatprep.subr.mxu0 0.0
    %1026 = vmatpush1.msra.mxu0 0.0
    %1027 = vmatprep.subr.mxu0 0.0
    %1028 = vmatpush1.msra.mxu0 0.0
    %1029 = vmatprep.subr.mxu0 0.0
    %1030 = vmatpush1.msra.mxu0 0.0
    %1031 = vmatprep.subr.mxu0 0.0
    %1032 = vmatpush1.msra.mxu0 0.0
    %1033 = vmatprep.subr.mxu0 0.0
    %1034 = vmatpush1.msra.mxu0 0.0
    %1035 = vmatprep.subr.mxu0 0.0
    %1036 = vmatpush1.msra.mxu0 0.0
    %1037 = vmatprep.subr.mxu0 0.0
    %1038 = vmatpush1.msra.mxu0 0.0
    %1039 = vmatprep.subr.mxu0 0.0
    %1040 = vmatpush1.msra.mxu0 0.0
    %1041 = vmatprep.subr.mxu0 0.0
    %1042 = vmatpush1.msra.mxu0 0.0
    %1043 = vmatprep.subr.mxu0 0.0
    %1044 = vmatpush1.msra.mxu0 0.0
    %1045 = vmatprep.subr.mxu0 0.0
    %1046 = vmatpush1.msra.mxu0 0.0
    %1047 = vmatprep.mubr.f32.mxu0 0.0
    %1048 = vmatmul.mubr.f32.gmra.mrb[0].mxu0 %v978
    %v1049 = vpop.f32.mrb[0].mxu0
    %v1050 = vadd.f32 %v974, %v1049
    %v1051 = vpop.f32.mrb[0].mxu0
    %1052 = vmatprep.mubr.f32.mxu0 0.0
    %1053 = vmatmul.mubr.f32.gmra.mrb[0].mxu0 %v981
    %v1054 = vpop.f32.mrb[0].mxu0
    %v1055 = vadd.f32 %v974, %v1054
    %v1056 = vpop.f32.mrb[0].mxu0
    %1057 = vdwg.mxu0
    %v1058 = vadd.f32 %v813, %v1050
    %v1059 = vadd.f32 %v814, %v1055
    %s1060 = scalar_lea.vmem %s2, 1
    %v1061 = vld [vmem:[%s1060] sm:$0x1]
    %s1062 = scalar_lea.vmem %s3, 1
    %v1063 = vld [vmem:[%s1062] sm:$0x1]
    %v1064 = vsel %vm81, %v1058, 0.0
    %1065 = vadd.xlane.f32.xlu0 %v1064
    %v1066 = vpop.xlane.xlu0 %1065
    %v1067 = vsel %vm81, %v1059, 0.0
    %1068 = vadd.xlane.f32.xlu0 %v1067
    %v1069 = vpop.xlane.xlu0 %1068
    %v1070 = vmul.f32 %v1066, %v88
    %v1071 = vmul.f32 %v1069, %v88
    %v1072 = vsub.f32 %v1058, %v1070
    %v1073 = vsub.f32 %v1059, %v1071
    %v1074 = vmul.f32 %v1072, %v1072
    %v1075 = vmul.f32 %v1073, %v1073
    %v1076 = vsel %vm81, %v1074, 0.0
    %1077 = vadd.xlane.f32.xlu0 %v1076
    %v1078 = vpop.xlane.xlu0 %1077
    %v1079 = vsel %vm81, %v1075, 0.0
    %1080 = vadd.xlane.f32.xlu0 %v1079
    %v1081 = vpop.xlane.xlu0 %1080
    %v1082 = vmul.f32 %v1078, %v88
    %v1083 = vmul.f32 %v1081, %v88
    %v1084 = vadd.f32 %v1082, 1e-05
    %v1085 = vadd.f32 %v1083, 1e-05
    %v1086 = vrsqrt.pop %v1084
    %v1087 = vrsqrt.pop %v1085
    %v1088 = vmul.f32 %v1072, %v1086
    %v1089 = vmul.f32 %v1073, %v1087
    %v1091 = vlaneseq
    %v1092 = vshrl.u32 %v1091, 7
    %v1093 = vsub.s32 0, %v1092
    %v1094 = vrot.slane %v1061, %v1093
    %v1096 = vmul.f32 %v1088, %v1094
    %v1097 = vmul.f32 %v1089, %v1094
    %v1099 = vlaneseq
    %v1100 = vshrl.u32 %v1099, 7
    %v1101 = vsub.s32 0, %v1100
    %v1102 = vrot.slane %v1063, %v1101
    %v1104 = vadd.f32 %v1096, %v1102
    %v1105 = vadd.f32 %v1097, %v1102
    %s1106 = scalar_lea.vmem %s4, 32
    %v1107 = vld [vmem:[%s1106] sm:$0xff]
    %v1108 = vld [vmem:[%s1106 + $0x8] sm:$0xff]
    %v1109 = vld [vmem:[%s1106 + $0x10] sm:$0xff]
    %v1110 = vld [vmem:[%s1106 + $0x18] sm:$0xff]
    %v1112 = vsel %vm81, %v1104, 0
    %v1115 = vsel %vm81, %v1105, 0
    %1117 = vmatprep.subr.mxu0 0.0
    %1118 = vmatpush1.msra.mxu0 %v1107
    %1119 = vmatprep.subr.mxu0 0.0
    %1120 = vmatpush1.msra.mxu0 %v1108
    %1121 = vmatprep.subr.mxu0 0.0
    %1122 = vmatpush1.msra.mxu0 %v1109
    %1123 = vmatprep.subr.mxu0 0.0
    %1124 = vmatpush1.msra.mxu0 %v1110
    %1125 = vmatprep.subr.mxu0 0.0
    %1126 = vmatpush1.msra.mxu0 0.0
    %1127 = vmatprep.subr.mxu0 0.0
    %1128 = vmatpush1.msra.mxu0 0.0
    %1129 = vmatprep.subr.mxu0 0.0
    %1130 = vmatpush1.msra.mxu0 0.0
    %1131 = vmatprep.subr.mxu0 0.0
    %1132 = vmatpush1.msra.mxu0 0.0
    %1133 = vmatprep.subr.mxu0 0.0
    %1134 = vmatpush1.msra.mxu0 0.0
    %1135 = vmatprep.subr.mxu0 0.0
    %1136 = vmatpush1.msra.mxu0 0.0
    %1137 = vmatprep.subr.mxu0 0.0
    %1138 = vmatpush1.msra.mxu0 0.0
    %1139 = vmatprep.subr.mxu0 0.0
    %1140 = vmatpush1.msra.mxu0 0.0
    %1141 = vmatprep.subr.mxu0 0.0
    %1142 = vmatpush1.msra.mxu0 0.0
    %1143 = vmatprep.subr.mxu0 0.0
    %1144 = vmatpush1.msra.mxu0 0.0
    %1145 = vmatprep.subr.mxu0 0.0
    %1146 = vmatpush1.msra.mxu0 0.0
    %1147 = vmatprep.subr.mxu0 0.0
    %1148 = vmatpush1.msra.mxu0 0.0
    %1149 = vmatprep.subr.mxu0 0.0
    %1150 = vmatpush1.msra.mxu0 0.0
    %1151 = vmatprep.subr.mxu0 0.0
    %1152 = vmatpush1.msra.mxu0 0.0
    %1153 = vmatprep.subr.mxu0 0.0
    %1154 = vmatpush1.msra.mxu0 0.0
    %1155 = vmatprep.subr.mxu0 0.0
    %1156 = vmatpush1.msra.mxu0 0.0
    %1157 = vmatprep.subr.mxu0 0.0
    %1158 = vmatpush1.msra.mxu0 0.0
    %1159 = vmatprep.subr.mxu0 0.0
    %1160 = vmatpush1.msra.mxu0 0.0
    %1161 = vmatprep.subr.mxu0 0.0
    %1162 = vmatpush1.msra.mxu0 0.0
    %1163 = vmatprep.subr.mxu0 0.0
    %1164 = vmatpush1.msra.mxu0 0.0
    %1165 = vmatprep.subr.mxu0 0.0
    %1166 = vmatpush1.msra.mxu0 0.0
    %1167 = vmatprep.subr.mxu0 0.0
    %1168 = vmatpush1.msra.mxu0 0.0
    %1169 = vmatprep.subr.mxu0 0.0
    %1170 = vmatpush1.msra.mxu0 0.0
    %1171 = vmatprep.subr.mxu0 0.0
    %1172 = vmatpush1.msra.mxu0 0.0
    %1173 = vmatprep.subr.mxu0 0.0
    %1174 = vmatpush1.msra.mxu0 0.0
    %1175 = vmatprep.subr.mxu0 0.0
    %1176 = vmatpush1.msra.mxu0 0.0
    %1177 = vmatprep.subr.mxu0 0.0
    %1178 = vmatpush1.msra.mxu0 0.0
    %1179 = vmatprep.subr.mxu0 0.0
    %1180 = vmatpush1.msra.mxu0 0.0
    %1181 = vmatprep.mubr.f32.mxu0 0.0
    %1182 = vmatmul.mubr.f32.gmra.mrb[0].mxu0 %v1112
    %v1183 = vpop.f32.mrb[0].mxu0
    %v1184 = vadd.f32 0.0, %v1183
    %v1185 = vpop.f32.mrb[0].mxu0
    %1186 = vmatprep.mubr.f32.mxu0 0.0
    %1187 = vmatmul.mubr.f32.gmra.mrb[0].mxu0 %v1115
    %v1188 = vpop.f32.mrb[0].mxu0
    %v1189 = vadd.f32 0.0, %v1188
    %v1190 = vpop.f32.mrb[0].mxu0
    %1191 = vdwg.mxu0
    %v1192 = vmul.f32 %v1184, %v215
    %v1193 = vmul.f32 %v1184, %v217
    %v1194 = vmul.f32 %v1184, %v219
    %v1195 = vmul.f32 %v1184, %v221
    %v1196 = vmul.f32 %v1189, %v215
    %v1197 = vmul.f32 %v1189, %v217
    %v1198 = vmul.f32 %v1189, %v219
    %v1199 = vmul.f32 %v1189, %v221
    %v1200 = vmul.f32 %v1184, %v235
    %v1201 = vmul.f32 %v1184, %v237
    %v1202 = vmul.f32 %v1184, %v239
    %v1203 = vmul.f32 %v1184, %v241
    %v1204 = vmul.f32 %v1189, %v235
    %v1205 = vmul.f32 %v1189, %v237
    %v1206 = vmul.f32 %v1189, %v239
    %v1207 = vmul.f32 %v1189, %v241
    %1212 = vrot.lane.b32.xlu0 %v1192, 96
    %v1213 = vpop.permute.xlu0 %1212
    %1214 = vrot.lane.b32.xlu0 %v1193, 96
    %v1215 = vpop.permute.xlu0 %1214
    %1216 = vrot.lane.b32.xlu0 %v1194, 96
    %v1217 = vpop.permute.xlu0 %1216
    %1218 = vrot.lane.b32.xlu0 %v1195, 96
    %v1219 = vpop.permute.xlu0 %1218
    %v1221 = vsel %vm81, %v1184, 0
    %v1223 = vsel %vm81, %v1213, 0
    %v1225 = vsel %vm81, %v1215, 0
    %v1227 = vsel %vm81, %v1217, 0
    %v1229 = vsel %vm81, %v1219, 0
    %1231 = vmatprep.subr.mxu0 0.0
    %1232 = vmatpush1.xpose.msra.mxu0 %v1223
    %1233 = vmatprep.subr.mxu0 0.0
    %1234 = vmatpush1.xpose.msra.mxu0 %v1225
    %1235 = vmatprep.subr.mxu0 0.0
    %1236 = vmatpush1.xpose.msra.mxu0 %v1227
    %1237 = vmatprep.subr.mxu0 0.0
    %1238 = vmatpush1.xpose.msra.mxu0 %v1229
    %1239 = vmatprep.subr.mxu0 0.0
    %1240 = vmatpush1.xpose.msra.mxu0 0.0
    %1241 = vmatprep.subr.mxu0 0.0
    %1242 = vmatpush1.xpose.msra.mxu0 0.0
    %1243 = vmatprep.subr.mxu0 0.0
    %1244 = vmatpush1.xpose.msra.mxu0 0.0
    %1245 = vmatprep.subr.mxu0 0.0
    %1246 = vmatpush1.xpose.msra.mxu0 0.0
    %1247 = vmatprep.subr.mxu0 0.0
    %1248 = vmatpush1.xpose.msra.mxu0 0.0
    %1249 = vmatprep.subr.mxu0 0.0
    %1250 = vmatpush1.xpose.msra.mxu0 0.0
    %1251 = vmatprep.subr.mxu0 0.0
    %1252 = vmatpush1.xpose.msra.mxu0 0.0
    %1253 = vmatprep.subr.mxu0 0.0
    %1254 = vmatpush1.xpose.msra.mxu0 0.0
    %1255 = vmatprep.subr.mxu0 0.0
    %1256 = vmatpush1.xpose.msra.mxu0 0.0
    %1257 = vmatprep.subr.mxu0 0.0
    %1258 = vmatpush1.xpose.msra.mxu0 0.0
    %1259 = vmatprep.subr.mxu0 0.0
    %1260 = vmatpush1.xpose.msra.mxu0 0.0
    %1261 = vmatprep.subr.mxu0 0.0
    %1262 = vmatpush1.xpose.msra.mxu0 0.0
    %1263 = vmatprep.subr.mxu0 0.0
    %1264 = vmatpush1.xpose.msra.mxu0 0.0
    %1265 = vmatprep.subr.mxu0 0.0
    %1266 = vmatpush1.xpose.msra.mxu0 0.0
    %1267 = vmatprep.subr.mxu0 0.0
    %1268 = vmatpush1.xpose.msra.mxu0 0.0
    %1269 = vmatprep.subr.mxu0 0.0
    %1270 = vmatpush1.xpose.msra.mxu0 0.0
    %1271 = vmatprep.subr.mxu0 0.0
    %1272 = vmatpush1.xpose.msra.mxu0 0.0
    %1273 = vmatprep.subr.mxu0 0.0
    %1274 = vmatpush1.xpose.msra.mxu0 0.0
    %1275 = vmatprep.subr.mxu0 0.0
    %1276 = vmatpush1.xpose.msra.mxu0 0.0
    %1277 = vmatprep.subr.mxu0 0.0
    %1278 = vmatpush1.xpose.msra.mxu0 0.0
    %1279 = vmatprep.subr.mxu0 0.0
    %1280 = vmatpush1.xpose.msra.mxu0 0.0
    %1281 = vmatprep.subr.mxu0 0.0
    %1282 = vmatpush1.xpose.msra.mxu0 0.0
    %1283 = vmatprep.subr.mxu0 0.0
    %1284 = vmatpush1.xpose.msra.mxu0 0.0
    %1285 = vmatprep.subr.mxu0 0.0
    %1286 = vmatpush1.xpose.msra.mxu0 0.0
    %1287 = vmatprep.subr.mxu0 0.0
    %1288 = vmatpush1.xpose.msra.mxu0 0.0
    %1289 = vmatprep.subr.mxu0 0.0
    %1290 = vmatpush1.xpose.msra.mxu0 0.0
    %1291 = vmatprep.subr.mxu0 0.0
    %1292 = vmatpush1.xpose.msra.mxu0 0.0
    %1293 = vmatprep.subr.mxu0 0.0
    %1294 = vmatpush1.xpose.msra.mxu0 0.0
    %1295 = vmatprep.mubr.f32.mxu0 0.0
    %1296 = vmatmul.mubr.f32.gmra.mrb[0].mxu0 %v1221
    %v1297 = vpop.f32.mrb[0].mxu0
    %v1298 = vadd.f32 0.0, %v1297
    %v1299 = vpop.f32.mrb[0].mxu0
    %1300 = vdwg.mxu0
    %1305 = vrot.lane.b32.xlu0 %v1196, 96
    %v1306 = vpop.permute.xlu0 %1305
    %1307 = vrot.lane.b32.xlu0 %v1197, 96
    %v1308 = vpop.permute.xlu0 %1307
    %1309 = vrot.lane.b32.xlu0 %v1198, 96
    %v1310 = vpop.permute.xlu0 %1309
    %1311 = vrot.lane.b32.xlu0 %v1199, 96
    %v1312 = vpop.permute.xlu0 %1311
    %v1314 = vsel %vm81, %v1189, 0
    %v1316 = vsel %vm81, %v1306, 0
    %v1318 = vsel %vm81, %v1308, 0
    %v1320 = vsel %vm81, %v1310, 0
    %v1322 = vsel %vm81, %v1312, 0
    %1324 = vmatprep.subr.mxu0 0.0
    %1325 = vmatpush1.xpose.msra.mxu0 %v1316
    %1326 = vmatprep.subr.mxu0 0.0
    %1327 = vmatpush1.xpose.msra.mxu0 %v1318
    %1328 = vmatprep.subr.mxu0 0.0
    %1329 = vmatpush1.xpose.msra.mxu0 %v1320
    %1330 = vmatprep.subr.mxu0 0.0
    %1331 = vmatpush1.xpose.msra.mxu0 %v1322
    %1332 = vmatprep.subr.mxu0 0.0
    %1333 = vmatpush1.xpose.msra.mxu0 0.0
    %1334 = vmatprep.subr.mxu0 0.0
    %1335 = vmatpush1.xpose.msra.mxu0 0.0
    %1336 = vmatprep.subr.mxu0 0.0
    %1337 = vmatpush1.xpose.msra.mxu0 0.0
    %1338 = vmatprep.subr.mxu0 0.0
    %1339 = vmatpush1.xpose.msra.mxu0 0.0
    %1340 = vmatprep.subr.mxu0 0.0
    %1341 = vmatpush1.xpose.msra.mxu0 0.0
    %1342 = vmatprep.subr.mxu0 0.0
    %1343 = vmatpush1.xpose.msra.mxu0 0.0
    %1344 = vmatprep.subr.mxu0 0.0
    %1345 = vmatpush1.xpose.msra.mxu0 0.0
    %1346 = vmatprep.subr.mxu0 0.0
    %1347 = vmatpush1.xpose.msra.mxu0 0.0
    %1348 = vmatprep.subr.mxu0 0.0
    %1349 = vmatpush1.xpose.msra.mxu0 0.0
    %1350 = vmatprep.subr.mxu0 0.0
    %1351 = vmatpush1.xpose.msra.mxu0 0.0
    %1352 = vmatprep.subr.mxu0 0.0
    %1353 = vmatpush1.xpose.msra.mxu0 0.0
    %1354 = vmatprep.subr.mxu0 0.0
    %1355 = vmatpush1.xpose.msra.mxu0 0.0
    %1356 = vmatprep.subr.mxu0 0.0
    %1357 = vmatpush1.xpose.msra.mxu0 0.0
    %1358 = vmatprep.subr.mxu0 0.0
    %1359 = vmatpush1.xpose.msra.mxu0 0.0
    %1360 = vmatprep.subr.mxu0 0.0
    %1361 = vmatpush1.xpose.msra.mxu0 0.0
    %1362 = vmatprep.subr.mxu0 0.0
    %1363 = vmatpush1.xpose.msra.mxu0 0.0
    %1364 = vmatprep.subr.mxu0 0.0
    %1365 = vmatpush1.xpose.msra.mxu0 0.0
    %1366 = vmatprep.subr.mxu0 0.0
    %1367 = vmatpush1.xpose.msra.mxu0 0.0
    %1368 = vmatprep.subr.mxu0 0.0
    %1369 = vmatpush1.xpose.msra.mxu0 0.0
    %1370 = vmatprep.subr.mxu0 0.0
    %1371 = vmatpush1.xpose.msra.mxu0 0.0
    %1372 = vmatprep.subr.mxu0 0.0
    %1373 = vmatpush1.xpose.msra.mxu0 0.0
    %1374 = vmatprep.subr.mxu0 0.0
    %1375 = vmatpush1.xpose.msra.mxu0 0.0
    %1376 = vmatprep.subr.mxu0 0.0
    %1377 = vmatpush1.xpose.msra.mxu0 0.0
    %1378 = vmatprep.subr.mxu0 0.0
    %1379 = vmatpush1.xpose.msra.mxu0 0.0
    %1380 = vmatprep.subr.mxu0 0.0
    %1381 = vmatpush1.xpose.msra.mxu0 0.0
    %1382 = vmatprep.subr.mxu0 0.0
    %1383 = vmatpush1.xpose.msra.mxu0 0.0
    %1384 = vmatprep.subr.mxu0 0.0
    %1385 = vmatpush1.xpose.msra.mxu0 0.0
    %1386 = vmatprep.subr.mxu0 0.0
    %1387 = vmatpush1.xpose.msra.mxu0 0.0
    %1388 = vmatprep.mubr.f32.mxu0 0.0
    %1389 = vmatmul.mubr.f32.gmra.mrb[0].mxu0 %v1314
    %v1390 = vpop.f32.mrb[0].mxu0
    %v1391 = vadd.f32 0.0, %v1390
    %v1392 = vpop.f32.mrb[0].mxu0
    %1393 = vdwg.mxu0
    %v1394 = vsel %vm81, %v1298, -inf
    %1395 = vmax.xlane.f32.xlu0 %v1394
    %v1396 = vpop.xlane.xlu0 %1395
    %v1397 = vsel %vm81, %v1391, -inf
    %1398 = vmax.xlane.f32.xlu0 %v1397
    %v1399 = vpop.xlane.xlu0 %1398
    %v1400 = vsub.f32 %v1298, %v1396
    %v1401 = vsub.f32 %v1391, %v1399
    %v1402 = vmul.f32 %v1400, 1.442695
    %v1403 = vpow.pop %v1402
    %v1404 = vmul.f32 %v1401, 1.442695
    %v1405 = vpow.pop %v1404
    %v1407 = vsel %vm81, %v1403, 0
    %v1410 = vsel %vm81, %v1405, 0
    %1412 = vmatprep.subr.mxu0 0.0
    %1413 = vmatpush1.msra.mxu0 %v75
    %1414 = vmatprep.subr.mxu0 0.0
    %1415 = vmatpush1.msra.mxu0 %v76
    %1416 = vmatprep.subr.mxu0 0.0
    %1417 = vmatpush1.msra.mxu0 %v77
    %1418 = vmatprep.subr.mxu0 0.0
    %1419 = vmatpush1.msra.mxu0 %v78
    %1420 = vmatprep.subr.mxu0 0.0
    %1421 = vmatpush1.msra.mxu0 0.0
    %1422 = vmatprep.subr.mxu0 0.0
    %1423 = vmatpush1.msra.mxu0 0.0
    %1424 = vmatprep.subr.mxu0 0.0
    %1425 = vmatpush1.msra.mxu0 0.0
    %1426 = vmatprep.subr.mxu0 0.0
    %1427 = vmatpush1.msra.mxu0 0.0
    %1428 = vmatprep.subr.mxu0 0.0
    %1429 = vmatpush1.msra.mxu0 0.0
    %1430 = vmatprep.subr.mxu0 0.0
    %1431 = vmatpush1.msra.mxu0 0.0
    %1432 = vmatprep.subr.mxu0 0.0
    %1433 = vmatpush1.msra.mxu0 0.0
    %1434 = vmatprep.subr.mxu0 0.0
    %1435 = vmatpush1.msra.mxu0 0.0
    %1436 = vmatprep.subr.mxu0 0.0
    %1437 = vmatpush1.msra.mxu0 0.0
    %1438 = vmatprep.subr.mxu0 0.0
    %1439 = vmatpush1.msra.mxu0 0.0
    %1440 = vmatprep.subr.mxu0 0.0
    %1441 = vmatpush1.msra.mxu0 0.0
    %1442 = vmatprep.subr.mxu0 0.0
    %1443 = vmatpush1.msra.mxu0 0.0
    %1444 = vmatprep.subr.mxu0 0.0
    %1445 = vmatpush1.msra.mxu0 0.0
    %1446 = vmatprep.subr.mxu0 0.0
    %1447 = vmatpush1.msra.mxu0 0.0
    %1448 = vmatprep.subr.mxu0 0.0
    %1449 = vmatpush1.msra.mxu0 0.0
    %1450 = vmatprep.subr.mxu0 0.0
    %1451 = vmatpush1.msra.mxu0 0.0
    %1452 = vmatprep.subr.mxu0 0.0
    %1453 = vmatpush1.msra.mxu0 0.0
    %1454 = vmatprep.subr.mxu0 0.0
    %1455 = vmatpush1.msra.mxu0 0.0
    %1456 = vmatprep.subr.mxu0 0.0
    %1457 = vmatpush1.msra.mxu0 0.0
    %1458 = vmatprep.subr.mxu0 0.0
    %1459 = vmatpush1.msra.mxu0 0.0
    %1460 = vmatprep.subr.mxu0 0.0
    %1461 = vmatpush1.msra.mxu0 0.0
    %1462 = vmatprep.subr.mxu0 0.0
    %1463 = vmatpush1.msra.mxu0 0.0
    %1464 = vmatprep.subr.mxu0 0.0
    %1465 = vmatpush1.msra.mxu0 0.0
    %1466 = vmatprep.subr.mxu0 0.0
    %1467 = vmatpush1.msra.mxu0 0.0
    %1468 = vmatprep.subr.mxu0 0.0
    %1469 = vmatpush1.msra.mxu0 0.0
    %1470 = vmatprep.subr.mxu0 0.0
    %1471 = vmatpush1.msra.mxu0 0.0
    %1472 = vmatprep.subr.mxu0 0.0
    %1473 = vmatpush1.msra.mxu0 0.0
    %1474 = vmatprep.subr.mxu0 0.0
    %1475 = vmatpush1.msra.mxu0 0.0
    %1476 = vmatprep.mubr.f32.mxu0 0.0
    %1477 = vmatmul.mubr.f32.gmra.mrb[0].mxu0 %v1407
    %v1478 = vpop.f32.mrb[0].mxu0
    %v1479 = vadd.f32 0.0, %v1478
    %v1480 = vpop.f32.mrb[0].mxu0
    %1481 = vmatprep.mubr.f32.mxu0 0.0
    %1482 = vmatmul.mubr.f32.gmra.mrb[0].mxu0 %v1410
    %v1483 = vpop.f32.mrb[0].mxu0
    %v1484 = vadd.f32 0.0, %v1483
    %v1485 = vpop.f32.mrb[0].mxu0
    %1486 = vdwg.mxu0
    %v1487 = vrcp.pop %v1479
    %v1488 = vrcp.pop %v1484
    %v1489 = vmul.f32 %v1479, %v1487
    %v1490 = vmul.f32 %v1484, %v1488
    %v1491 = vsub.f32 2.0, %v1489
    %v1492 = vsub.f32 2.0, %v1490
    %v1493 = vmul.f32 %v1487, %v1491
    %v1494 = vmul.f32 %v1488, %v1492
    %v1495 = vmul.f32 %v1403, %v1493
    %v1496 = vmul.f32 %v1405, %v1494
    %1501 = vrot.lane.b32.xlu0 %v1200, 64
    %v1502 = vpop.permute.xlu0 %1501
    %1503 = vrot.lane.b32.xlu0 %v1201, 64
    %v1504 = vpop.permute.xlu0 %1503
    %1505 = vrot.lane.b32.xlu0 %v1202, 64
    %v1506 = vpop.permute.xlu0 %1505
    %1507 = vrot.lane.b32.xlu0 %v1203, 64
    %v1508 = vpop.permute.xlu0 %1507
    %v1514 = vsel %vm81, %v1495, 0
    %1516 = vmatprep.subr.mxu0 0.0
    %1517 = vmatpush1.msra.mxu0 %v1502
    %1518 = vmatprep.subr.mxu0 0.0
    %1519 = vmatpush1.msra.mxu0 %v1504
    %1520 = vmatprep.subr.mxu0 0.0
    %1521 = vmatpush1.msra.mxu0 %v1506
    %1522 = vmatprep.subr.mxu0 0.0
    %1523 = vmatpush1.msra.mxu0 %v1508
    %1524 = vmatprep.subr.mxu0 0.0
    %1525 = vmatpush1.msra.mxu0 0.0
    %1526 = vmatprep.subr.mxu0 0.0
    %1527 = vmatpush1.msra.mxu0 0.0
    %1528 = vmatprep.subr.mxu0 0.0
    %1529 = vmatpush1.msra.mxu0 0.0
    %1530 = vmatprep.subr.mxu0 0.0
    %1531 = vmatpush1.msra.mxu0 0.0
    %1532 = vmatprep.subr.mxu0 0.0
    %1533 = vmatpush1.msra.mxu0 0.0
    %1534 = vmatprep.subr.mxu0 0.0
    %1535 = vmatpush1.msra.mxu0 0.0
    %1536 = vmatprep.subr.mxu0 0.0
    %1537 = vmatpush1.msra.mxu0 0.0
    %1538 = vmatprep.subr.mxu0 0.0
    %1539 = vmatpush1.msra.mxu0 0.0
    %1540 = vmatprep.subr.mxu0 0.0
    %1541 = vmatpush1.msra.mxu0 0.0
    %1542 = vmatprep.subr.mxu0 0.0
    %1543 = vmatpush1.msra.mxu0 0.0
    %1544 = vmatprep.subr.mxu0 0.0
    %1545 = vmatpush1.msra.mxu0 0.0
    %1546 = vmatprep.subr.mxu0 0.0
    %1547 = vmatpush1.msra.mxu0 0.0
    %1548 = vmatprep.subr.mxu0 0.0
    %1549 = vmatpush1.msra.mxu0 0.0
    %1550 = vmatprep.subr.mxu0 0.0
    %1551 = vmatpush1.msra.mxu0 0.0
    %1552 = vmatprep.subr.mxu0 0.0
    %1553 = vmatpush1.msra.mxu0 0.0
    %1554 = vmatprep.subr.mxu0 0.0
    %1555 = vmatpush1.msra.mxu0 0.0
    %1556 = vmatprep.subr.mxu0 0.0
    %1557 = vmatpush1.msra.mxu0 0.0
    %1558 = vmatprep.subr.mxu0 0.0
    %1559 = vmatpush1.msra.mxu0 0.0
    %1560 = vmatprep.subr.mxu0 0.0
    %1561 = vmatpush1.msra.mxu0 0.0
    %1562 = vmatprep.subr.mxu0 0.0
    %1563 = vmatpush1.msra.mxu0 0.0
    %1564 = vmatprep.subr.mxu0 0.0
    %1565 = vmatpush1.msra.mxu0 0.0
    %1566 = vmatprep.subr.mxu0 0.0
    %1567 = vmatpush1.msra.mxu0 0.0
    %1568 = vmatprep.subr.mxu0 0.0
    %1569 = vmatpush1.msra.mxu0 0.0
    %1570 = vmatprep.subr.mxu0 0.0
    %1571 = vmatpush1.msra.mxu0 0.0
    %1572 = vmatprep.subr.mxu0 0.0
    %1573 = vmatpush1.msra.mxu0 0.0
    %1574 = vmatprep.subr.mxu0 0.0
    %1575 = vmatpush1.msra.mxu0 0.0
    %1576 = vmatprep.subr.mxu0 0.0
    %1577 = vmatpush1.msra.mxu0 0.0
    %1578 = vmatprep.subr.mxu0 0.0
    %1579 = vmatpush1.msra.mxu0 0.0
    %1580 = vmatprep.mubr.f32.mxu0 0.0
    %1581 = vmatmul.mubr.f32.gmra.mrb[0].mxu0 %v1514
    %v1582 = vpop.f32.mrb[0].mxu0
    %v1583 = vadd.f32 0.0, %v1582
    %v1584 = vpop.f32.mrb[0].mxu0
    %1585 = vdwg.mxu0
    %1590 = vrot.lane.b32.xlu0 %v1204, 64
    %v1591 = vpop.permute.xlu0 %1590
    %1592 = vrot.lane.b32.xlu0 %v1205, 64
    %v1593 = vpop.permute.xlu0 %1592
    %1594 = vrot.lane.b32.xlu0 %v1206, 64
    %v1595 = vpop.permute.xlu0 %1594
    %1596 = vrot.lane.b32.xlu0 %v1207, 64
    %v1597 = vpop.permute.xlu0 %1596
    %v1603 = vsel %vm81, %v1496, 0
    %1605 = vmatprep.subr.mxu0 0.0
    %1606 = vmatpush1.msra.mxu0 %v1591
    %1607 = vmatprep.subr.mxu0 0.0
    %1608 = vmatpush1.msra.mxu0 %v1593
    %1609 = vmatprep.subr.mxu0 0.0
    %1610 = vmatpush1.msra.mxu0 %v1595
    %1611 = vmatprep.subr.mxu0 0.0
    %1612 = vmatpush1.msra.mxu0 %v1597
    %1613 = vmatprep.subr.mxu0 0.0
    %1614 = vmatpush1.msra.mxu0 0.0
    %1615 = vmatprep.subr.mxu0 0.0
    %1616 = vmatpush1.msra.mxu0 0.0
    %1617 = vmatprep.subr.mxu0 0.0
    %1618 = vmatpush1.msra.mxu0 0.0
    %1619 = vmatprep.subr.mxu0 0.0
    %1620 = vmatpush1.msra.mxu0 0.0
    %1621 = vmatprep.subr.mxu0 0.0
    %1622 = vmatpush1.msra.mxu0 0.0
    %1623 = vmatprep.subr.mxu0 0.0
    %1624 = vmatpush1.msra.mxu0 0.0
    %1625 = vmatprep.subr.mxu0 0.0
    %1626 = vmatpush1.msra.mxu0 0.0
    %1627 = vmatprep.subr.mxu0 0.0
    %1628 = vmatpush1.msra.mxu0 0.0
    %1629 = vmatprep.subr.mxu0 0.0
    %1630 = vmatpush1.msra.mxu0 0.0
    %1631 = vmatprep.subr.mxu0 0.0
    %1632 = vmatpush1.msra.mxu0 0.0
    %1633 = vmatprep.subr.mxu0 0.0
    %1634 = vmatpush1.msra.mxu0 0.0
    %1635 = vmatprep.subr.mxu0 0.0
    %1636 = vmatpush1.msra.mxu0 0.0
    %1637 = vmatprep.subr.mxu0 0.0
    %1638 = vmatpush1.msra.mxu0 0.0
    %1639 = vmatprep.subr.mxu0 0.0
    %1640 = vmatpush1.msra.mxu0 0.0
    %1641 = vmatprep.subr.mxu0 0.0
    %1642 = vmatpush1.msra.mxu0 0.0
    %1643 = vmatprep.subr.mxu0 0.0
    %1644 = vmatpush1.msra.mxu0 0.0
    %1645 = vmatprep.subr.mxu0 0.0
    %1646 = vmatpush1.msra.mxu0 0.0
    %1647 = vmatprep.subr.mxu0 0.0
    %1648 = vmatpush1.msra.mxu0 0.0
    %1649 = vmatprep.subr.mxu0 0.0
    %1650 = vmatpush1.msra.mxu0 0.0
    %1651 = vmatprep.subr.mxu0 0.0
    %1652 = vmatpush1.msra.mxu0 0.0
    %1653 = vmatprep.subr.mxu0 0.0
    %1654 = vmatpush1.msra.mxu0 0.0
    %1655 = vmatprep.subr.mxu0 0.0
    %1656 = vmatpush1.msra.mxu0 0.0
    %1657 = vmatprep.subr.mxu0 0.0
    %1658 = vmatpush1.msra.mxu0 0.0
    %1659 = vmatprep.subr.mxu0 0.0
    %1660 = vmatpush1.msra.mxu0 0.0
    %1661 = vmatprep.subr.mxu0 0.0
    %1662 = vmatpush1.msra.mxu0 0.0
    %1663 = vmatprep.subr.mxu0 0.0
    %1664 = vmatpush1.msra.mxu0 0.0
    %1665 = vmatprep.subr.mxu0 0.0
    %1666 = vmatpush1.msra.mxu0 0.0
    %1667 = vmatprep.subr.mxu0 0.0
    %1668 = vmatpush1.msra.mxu0 0.0
    %1669 = vmatprep.mubr.f32.mxu0 0.0
    %1670 = vmatmul.mubr.f32.gmra.mrb[0].mxu0 %v1603
    %v1671 = vpop.f32.mrb[0].mxu0
    %v1672 = vadd.f32 0.0, %v1671
    %v1673 = vpop.f32.mrb[0].mxu0
    %1674 = vdwg.mxu0
    %s1675 = scalar_lea.vmem %s5, 32
    %v1676 = vld [vmem:[%s1675] sm:$0xff]
    %v1677 = vld [vmem:[%s1675 + $0x8] sm:$0xff]
    %v1678 = vld [vmem:[%s1675 + $0x10] sm:$0xff]
    %v1679 = vld [vmem:[%s1675 + $0x18] sm:$0xff]
    %s1680 = scalar_lea.vmem %s6, 1
    %v1681 = vld [vmem:[%s1680] sm:$0x1]
    %v1683 = vlaneseq
    %v1684 = vshrl.u32 %v1683, 7
    %v1685 = vsub.s32 0, %v1684
    %v1686 = vrot.slane %v1681, %v1685
    %v1689 = vsel %vm81, %v1583, 0
    %v1692 = vsel %vm81, %v1672, 0
    %1694 = vmatprep.subr.mxu0 0.0
    %1695 = vmatpush1.msra.mxu0 %v1676
    %1696 = vmatprep.subr.mxu0 0.0
    %1697 = vmatpush1.msra.mxu0 %v1677
    %1698 = vmatprep.subr.mxu0 0.0
    %1699 = vmatpush1.msra.mxu0 %v1678
    %1700 = vmatprep.subr.mxu0 0.0
    %1701 = vmatpush1.msra.mxu0 %v1679
    %1702 = vmatprep.subr.mxu0 0.0
    %1703 = vmatpush1.msra.mxu0 0.0
    %1704 = vmatprep.subr.mxu0 0.0
    %1705 = vmatpush1.msra.mxu0 0.0
    %1706 = vmatprep.subr.mxu0 0.0
    %1707 = vmatpush1.msra.mxu0 0.0
    %1708 = vmatprep.subr.mxu0 0.0
    %1709 = vmatpush1.msra.mxu0 0.0
    %1710 = vmatprep.subr.mxu0 0.0
    %1711 = vmatpush1.msra.mxu0 0.0
    %1712 = vmatprep.subr.mxu0 0.0
    %1713 = vmatpush1.msra.mxu0 0.0
    %1714 = vmatprep.subr.mxu0 0.0
    %1715 = vmatpush1.msra.mxu0 0.0
    %1716 = vmatprep.subr.mxu0 0.0
    %1717 = vmatpush1.msra.mxu0 0.0
    %1718 = vmatprep.subr.mxu0 0.0
    %1719 = vmatpush1.msra.mxu0 0.0
    %1720 = vmatprep.subr.mxu0 0.0
    %1721 = vmatpush1.msra.mxu0 0.0
    %1722 = vmatprep.subr.mxu0 0.0
    %1723 = vmatpush1.msra.mxu0 0.0
    %1724 = vmatprep.subr.mxu0 0.0
    %1725 = vmatpush1.msra.mxu0 0.0
    %1726 = vmatprep.subr.mxu0 0.0
    %1727 = vmatpush1.msra.mxu0 0.0
    %1728 = vmatprep.subr.mxu0 0.0
    %1729 = vmatpush1.msra.mxu0 0.0
    %1730 = vmatprep.subr.mxu0 0.0
    %1731 = vmatpush1.msra.mxu0 0.0
    %1732 = vmatprep.subr.mxu0 0.0
    %1733 = vmatpush1.msra.mxu0 0.0
    %1734 = vmatprep.subr.mxu0 0.0
    %1735 = vmatpush1.msra.mxu0 0.0
    %1736 = vmatprep.subr.mxu0 0.0
    %1737 = vmatpush1.msra.mxu0 0.0
    %1738 = vmatprep.subr.mxu0 0.0
    %1739 = vmatpush1.msra.mxu0 0.0
    %1740 = vmatprep.subr.mxu0 0.0
    %1741 = vmatpush1.msra.mxu0 0.0
    %1742 = vmatprep.subr.mxu0 0.0
    %1743 = vmatpush1.msra.mxu0 0.0
    %1744 = vmatprep.subr.mxu0 0.0
    %1745 = vmatpush1.msra.mxu0 0.0
    %1746 = vmatprep.subr.mxu0 0.0
    %1747 = vmatpush1.msra.mxu0 0.0
    %1748 = vmatprep.subr.mxu0 0.0
    %1749 = vmatpush1.msra.mxu0 0.0
    %1750 = vmatprep.subr.mxu0 0.0
    %1751 = vmatpush1.msra.mxu0 0.0
    %1752 = vmatprep.subr.mxu0 0.0
    %1753 = vmatpush1.msra.mxu0 0.0
    %1754 = vmatprep.subr.mxu0 0.0
    %1755 = vmatpush1.msra.mxu0 0.0
    %1756 = vmatprep.subr.mxu0 0.0
    %1757 = vmatpush1.msra.mxu0 0.0
    %1758 = vmatprep.mubr.f32.mxu0 0.0
    %1759 = vmatmul.mubr.f32.gmra.mrb[0].mxu0 %v1689
    %v1760 = vpop.f32.mrb[0].mxu0
    %v1761 = vadd.f32 %v1686, %v1760
    %v1762 = vpop.f32.mrb[0].mxu0
    %1763 = vmatprep.mubr.f32.mxu0 0.0
    %1764 = vmatmul.mubr.f32.gmra.mrb[0].mxu0 %v1692
    %v1765 = vpop.f32.mrb[0].mxu0
    %v1766 = vadd.f32 %v1686, %v1765
    %v1767 = vpop.f32.mrb[0].mxu0
    %1768 = vdwg.mxu0
    %v1769 = vadd.f32 %v1058, %v1761
    %v1770 = vadd.f32 %v1059, %v1766
    %s1771 = scalar_lea.vmem %s7, 1
    %v1772 = vld [vmem:[%s1771] sm:$0x1]
    %s1773 = scalar_lea.vmem %s8, 1
    %v1774 = vld [vmem:[%s1773] sm:$0x1]
    %v1775 = vsel %vm81, %v1769, 0.0
    %1776 = vadd.xlane.f32.xlu0 %v1775
    %v1777 = vpop.xlane.xlu0 %1776
    %v1778 = vsel %vm81, %v1770, 0.0
    %1779 = vadd.xlane.f32.xlu0 %v1778
    %v1780 = vpop.xlane.xlu0 %1779
    %v1781 = vmul.f32 %v1777, %v88
    %v1782 = vmul.f32 %v1780, %v88
    %v1783 = vsub.f32 %v1769, %v1781
    %v1784 = vsub.f32 %v1770, %v1782
    %v1785 = vmul.f32 %v1783, %v1783
    %v1786 = vmul.f32 %v1784, %v1784
    %v1787 = vsel %vm81, %v1785, 0.0
    %1788 = vadd.xlane.f32.xlu0 %v1787
    %v1789 = vpop.xlane.xlu0 %1788
    %v1790 = vsel %vm81, %v1786, 0.0
    %1791 = vadd.xlane.f32.xlu0 %v1790
    %v1792 = vpop.xlane.xlu0 %1791
    %v1793 = vmul.f32 %v1789, %v88
    %v1794 = vmul.f32 %v1792, %v88
    %v1795 = vadd.f32 %v1793, 1e-05
    %v1796 = vadd.f32 %v1794, 1e-05
    %v1797 = vrsqrt.pop %v1795
    %v1798 = vrsqrt.pop %v1796
    %v1799 = vmul.f32 %v1783, %v1797
    %v1800 = vmul.f32 %v1784, %v1798
    %v1802 = vlaneseq
    %v1803 = vshrl.u32 %v1802, 7
    %v1804 = vsub.s32 0, %v1803
    %v1805 = vrot.slane %v1772, %v1804
    %v1807 = vmul.f32 %v1799, %v1805
    %v1808 = vmul.f32 %v1800, %v1805
    %v1810 = vlaneseq
    %v1811 = vshrl.u32 %v1810, 7
    %v1812 = vsub.s32 0, %v1811
    %v1813 = vrot.slane %v1774, %v1812
    %v1815 = vadd.f32 %v1807, %v1813
    %v1816 = vadd.f32 %v1808, %v1813
    %s1817 = scalar_lea.vmem %s9, 32
    %v1818 = vld [vmem:[%s1817] sm:$0xff]
    %v1819 = vld [vmem:[%s1817 + $0x8] sm:$0xff]
    %v1820 = vld [vmem:[%s1817 + $0x10] sm:$0xff]
    %v1821 = vld [vmem:[%s1817 + $0x18] sm:$0xff]
    %s1822 = scalar_lea.vmem %s10, 1
    %v1823 = vld [vmem:[%s1822] sm:$0x1]
    %v1825 = vlaneseq
    %v1826 = vshrl.u32 %v1825, 7
    %v1827 = vsub.s32 0, %v1826
    %v1828 = vrot.slane %v1823, %v1827
    %v1831 = vsel %vm81, %v1815, 0
    %v1834 = vsel %vm81, %v1816, 0
    %1836 = vmatprep.subr.mxu0 0.0
    %1837 = vmatpush1.msra.mxu0 %v1818
    %1838 = vmatprep.subr.mxu0 0.0
    %1839 = vmatpush1.msra.mxu0 %v1819
    %1840 = vmatprep.subr.mxu0 0.0
    %1841 = vmatpush1.msra.mxu0 %v1820
    %1842 = vmatprep.subr.mxu0 0.0
    %1843 = vmatpush1.msra.mxu0 %v1821
    %1844 = vmatprep.subr.mxu0 0.0
    %1845 = vmatpush1.msra.mxu0 0.0
    %1846 = vmatprep.subr.mxu0 0.0
    %1847 = vmatpush1.msra.mxu0 0.0
    %1848 = vmatprep.subr.mxu0 0.0
    %1849 = vmatpush1.msra.mxu0 0.0
    %1850 = vmatprep.subr.mxu0 0.0
    %1851 = vmatpush1.msra.mxu0 0.0
    %1852 = vmatprep.subr.mxu0 0.0
    %1853 = vmatpush1.msra.mxu0 0.0
    %1854 = vmatprep.subr.mxu0 0.0
    %1855 = vmatpush1.msra.mxu0 0.0
    %1856 = vmatprep.subr.mxu0 0.0
    %1857 = vmatpush1.msra.mxu0 0.0
    %1858 = vmatprep.subr.mxu0 0.0
    %1859 = vmatpush1.msra.mxu0 0.0
    %1860 = vmatprep.subr.mxu0 0.0
    %1861 = vmatpush1.msra.mxu0 0.0
    %1862 = vmatprep.subr.mxu0 0.0
    %1863 = vmatpush1.msra.mxu0 0.0
    %1864 = vmatprep.subr.mxu0 0.0
    %1865 = vmatpush1.msra.mxu0 0.0
    %1866 = vmatprep.subr.mxu0 0.0
    %1867 = vmatpush1.msra.mxu0 0.0
    %1868 = vmatprep.subr.mxu0 0.0
    %1869 = vmatpush1.msra.mxu0 0.0
    %1870 = vmatprep.subr.mxu0 0.0
    %1871 = vmatpush1.msra.mxu0 0.0
    %1872 = vmatprep.subr.mxu0 0.0
    %1873 = vmatpush1.msra.mxu0 0.0
    %1874 = vmatprep.subr.mxu0 0.0
    %1875 = vmatpush1.msra.mxu0 0.0
    %1876 = vmatprep.subr.mxu0 0.0
    %1877 = vmatpush1.msra.mxu0 0.0
    %1878 = vmatprep.subr.mxu0 0.0
    %1879 = vmatpush1.msra.mxu0 0.0
    %1880 = vmatprep.subr.mxu0 0.0
    %1881 = vmatpush1.msra.mxu0 0.0
    %1882 = vmatprep.subr.mxu0 0.0
    %1883 = vmatpush1.msra.mxu0 0.0
    %1884 = vmatprep.subr.mxu0 0.0
    %1885 = vmatpush1.msra.mxu0 0.0
    %1886 = vmatprep.subr.mxu0 0.0
    %1887 = vmatpush1.msra.mxu0 0.0
    %1888 = vmatprep.subr.mxu0 0.0
    %1889 = vmatpush1.msra.mxu0 0.0
    %1890 = vmatprep.subr.mxu0 0.0
    %1891 = vmatpush1.msra.mxu0 0.0
    %1892 = vmatprep.subr.mxu0 0.0
    %1893 = vmatpush1.msra.mxu0 0.0
    %1894 = vmatprep.subr.mxu0 0.0
    %1895 = vmatpush1.msra.mxu0 0.0
    %1896 = vmatprep.subr.mxu0 0.0
    %1897 = vmatpush1.msra.mxu0 0.0
    %1898 = vmatprep.subr.mxu0 0.0
    %1899 = vmatpush1.msra.mxu0 0.0
    %1900 = vmatprep.mubr.f32.mxu0 0.0
    %1901 = vmatmul.mubr.f32.gmra.mrb[0].mxu0 %v1831
    %v1902 = vpop.f32.mrb[0].mxu0
    %v1903 = vadd.f32 %v1828, %v1902
    %v1904 = vpop.f32.mrb[0].mxu0
    %1905 = vmatprep.mubr.f32.mxu0 0.0
    %1906 = vmatmul.mubr.f32.gmra.mrb[0].mxu0 %v1834
    %v1907 = vpop.f32.mrb[0].mxu0
    %v1908 = vadd.f32 %v1828, %v1907
    %v1909 = vpop.f32.mrb[0].mxu0
    %1910 = vdwg.mxu0
    %v1911 = vmul.f32 %v1903, 0.5
    %v1912 = vmul.f32 %v1908, 0.5
    %v1913 = vmul.f32 %v1903, 0.70710677
    %v1914 = vmul.f32 %v1908, 0.70710677
    %v1915 = verf.f32.pop %v1913
    %v1916 = verf.f32.pop %v1914
    %v1917 = vadd.f32 %v1915, 1.0
    %v1918 = vadd.f32 %v1916, 1.0
    %v1919 = vmul.f32 %v1911, %v1917
    %v1920 = vmul.f32 %v1912, %v1918
    %s1921 = scalar_lea.vmem %s11, 64
    %v1922 = vld [vmem:[%s1921] sm:$0xff]
    %v1923 = vld [vmem:[%s1921 + $0x8] sm:$0xff]
    %v1924 = vld [vmem:[%s1921 + $0x10] sm:$0xff]
    %v1925 = vld [vmem:[%s1921 + $0x18] sm:$0xff]
    %v1926 = vld [vmem:[%s1921 + $0x20] sm:$0xff]
    %v1927 = vld [vmem:[%s1921 + $0x28] sm:$0xff]
    %v1928 = vld [vmem:[%s1921 + $0x30] sm:$0xff]
    %v1929 = vld [vmem:[%s1921 + $0x38] sm:$0xff]
    %s1930 = scalar_lea.vmem %s12, 1
    %v1931 = vld [vmem:[%s1930] sm:$0x1]
    %v1933 = vlaneseq
    %v1934 = vshrl.u32 %v1933, 7
    %v1935 = vsub.s32 0, %v1934
    %v1936 = vrot.slane %v1931, %v1935
    %v1939 = vsel %vm976, %v1919, 0
    %v1942 = vsel %vm976, %v1920, 0
    %1944 = vmatprep.subr.mxu0 0.0
    %1945 = vmatpush1.msra.mxu0 %v1922
    %1946 = vmatprep.subr.mxu0 0.0
    %1947 = vmatpush1.msra.mxu0 %v1923
    %1948 = vmatprep.subr.mxu0 0.0
    %1949 = vmatpush1.msra.mxu0 %v1924
    %1950 = vmatprep.subr.mxu0 0.0
    %1951 = vmatpush1.msra.mxu0 %v1925
    %1952 = vmatprep.subr.mxu0 0.0
    %1953 = vmatpush1.msra.mxu0 %v1926
    %1954 = vmatprep.subr.mxu0 0.0
    %1955 = vmatpush1.msra.mxu0 %v1927
    %1956 = vmatprep.subr.mxu0 0.0
    %1957 = vmatpush1.msra.mxu0 %v1928
    %1958 = vmatprep.subr.mxu0 0.0
    %1959 = vmatpush1.msra.mxu0 %v1929
    %1960 = vmatprep.subr.mxu0 0.0
    %1961 = vmatpush1.msra.mxu0 0.0
    %1962 = vmatprep.subr.mxu0 0.0
    %1963 = vmatpush1.msra.mxu0 0.0
    %1964 = vmatprep.subr.mxu0 0.0
    %1965 = vmatpush1.msra.mxu0 0.0
    %1966 = vmatprep.subr.mxu0 0.0
    %1967 = vmatpush1.msra.mxu0 0.0
    %1968 = vmatprep.subr.mxu0 0.0
    %1969 = vmatpush1.msra.mxu0 0.0
    %1970 = vmatprep.subr.mxu0 0.0
    %1971 = vmatpush1.msra.mxu0 0.0
    %1972 = vmatprep.subr.mxu0 0.0
    %1973 = vmatpush1.msra.mxu0 0.0
    %1974 = vmatprep.subr.mxu0 0.0
    %1975 = vmatpush1.msra.mxu0 0.0
    %1976 = vmatprep.subr.mxu0 0.0
    %1977 = vmatpush1.msra.mxu0 0.0
    %1978 = vmatprep.subr.mxu0 0.0
    %1979 = vmatpush1.msra.mxu0 0.0
    %1980 = vmatprep.subr.mxu0 0.0
    %1981 = vmatpush1.msra.mxu0 0.0
    %1982 = vmatprep.subr.mxu0 0.0
    %1983 = vmatpush1.msra.mxu0 0.0
    %1984 = vmatprep.subr.mxu0 0.0
    %1985 = vmatpush1.msra.mxu0 0.0
    %1986 = vmatprep.subr.mxu0 0.0
    %1987 = vmatpush1.msra.mxu0 0.0
    %1988 = vmatprep.subr.mxu0 0.0
    %1989 = vmatpush1.msra.mxu0 0.0
    %1990 = vmatprep.subr.mxu0 0.0
    %1991 = vmatpush1.msra.mxu0 0.0
    %1992 = vmatprep.subr.mxu0 0.0
    %1993 = vmatpush1.msra.mxu0 0.0
    %1994 = vmatprep.subr.mxu0 0.0
    %1995 = vmatpush1.msra.mxu0 0.0
    %1996 = vmatprep.subr.mxu0 0.0
    %1997 = vmatpush1.msra.mxu0 0.0
    %1998 = vmatprep.subr.mxu0 0.0
    %1999 = vmatpush1.msra.mxu0 0.0
    %2000 = vmatprep.subr.mxu0 0.0
    %2001 = vmatpush1.msra.mxu0 0.0
    %2002 = vmatprep.subr.mxu0 0.0
    %2003 = vmatpush1.msra.mxu0 0.0
    %2004 = vmatprep.subr.mxu0 0.0
    %2005 = vmatpush1.msra.mxu0 0.0
    %2006 = vmatprep.subr.mxu0 0.0
    %2007 = vmatpush1.msra.mxu0 0.0
    %2008 = vmatprep.mubr.f32.mxu0 0.0
    %2009 = vmatmul.mubr.f32.gmra.mrb[0].mxu0 %v1939
    %v2010 = vpop.f32.mrb[0].mxu0
    %v2011 = vadd.f32 %v1936, %v2010
    %v2012 = vpop.f32.mrb[0].mxu0
    %2013 = vmatprep.mubr.f32.mxu0 0.0
    %2014 = vmatmul.mubr.f32.gmra.mrb[0].mxu0 %v1942
    %v2015 = vpop.f32.mrb[0].mxu0
    %v2016 = vadd.f32 %v1936, %v2015
    %v2017 = vpop.f32.mrb[0].mxu0
    %2018 = vdwg.mxu0
    %v2019 = vadd.f32 %v1769, %v2011
    %v2020 = vadd.f32 %v1770, %v2016
    %2021 = vst.msk [vmem:[#allocation7] sm:$0xff] %vm81, %v2019
    %2022 = vst.msk [vmem:[#allocation7 + $0x8] sm:$0xff] %vm81, %v2020
    // Predicated region
    $region62: #{transformer_forward.1} parent=1 // pred_check
      _
    $region63: #{transformer_forward.1} parent=1 // pred_check_branch
      %2024 = sbr.rel (0) target = $region65
    $region64: #{transformer_forward.1} parent=1 // pred_region
      %s2026 = ssub.s32 256, 256
      %2027 = vsyncadd [#allocation4], %s2026
      %s2028 = sshll.u32 [#allocation7], 4
      %s2029 = int_to_ptr.vmem [resolvable:$true] %s2028
      %2034 = dma.vmem_to_hbm [thread:$0]  %s2029, 256, %s13, [#allocation4], 128, 128, 8
    $region65: #{transformer_forward.1} parent=1 // pred_fallthru
      _
    // Predicated region
    $region66: #{transformer_forward.1} parent=1 // pred_check
      _
    $region67: #{transformer_forward.1} parent=1 // pred_check_branch
      %2036 = sbr.rel (0) target = $region69
    $region68: #{transformer_forward.1} parent=1 // pred_region
      %2037 = dma.done [#allocation4], 256
    $region69: #{transformer_forward.1} parent=1 // pred_fallthru
      _
    %2038 = vsyncpa [#allocation3], 1
    %2039 = vsyncpa [#allocation6], 1
    %2040 = vsyncpa [#allocation4], 1

</llo_original>
